<compile_context>
chip_gen: v7x
topology: tpu7x:2x2x1
jax: 0.10.0
libtpu: 0.0.40
codegen_flags: <defaults>
</compile_context>

<pallas_src>
import functools

import jax
import jax.numpy as jnp
from jax.experimental import pallas as pl
from jax.experimental.pallas import tpu as pltpu

BN_EPS = 1e-5


def _round_up(x, m):
    return (x + m - 1) // m * m


def _pick_tile(total, candidates):
    # largest candidate that divides `total` and still leaves >= 2 grid steps (for pipelining)
    for c in candidates:
        if total % c == 0 and total >= 2 * c:
            return c
    return total


# ---------------- Kernel A: conv matmul + BN statistics ----------------
def conv_stats_kernel(x_ref, w_ref, y_ref, sum_ref, sq_ref):
    # x_ref: (TM, K) bf16 im2col rows; w_ref: (K, Cp) bf16; f32 accumulate on the MXU.
    y = jnp.dot(x_ref[...], w_ref[...], preferred_element_type=jnp.float32)
    y_ref[...] = y

    @pl.when(pl.program_id(0) == 0)
    def _():
        sum_ref[...] = jnp.zeros_like(sum_ref)
        sq_ref[...] = jnp.zeros_like(sq_ref)

    # Single-pass global stats: accumulate per-channel sum and sum-of-squares across row tiles.
    sum_ref[...] += jnp.sum(y, axis=0, keepdims=True)
    sq_ref[...] += jnp.sum(y * y, axis=0, keepdims=True)


# -------- Kernel B: BN normalize + affine + ReLU + 2x2 max pool (fused) --------
def bn_relu_pool_kernel(y_ref, sum_ref, sq_ref, gamma_ref, beta_ref, o_ref, *, inv_m, eps):
    mean = sum_ref[...] * inv_m                      # (1, Cp)
    var = sq_ref[...] * inv_m - mean * mean          # biased variance (PyTorch BN train-mode)
    scale = gamma_ref[...] * jax.lax.rsqrt(var + eps)
    shift = beta_ref[...] - mean * scale
    # y_ref: (4, TP, Cp) -- the 4 members of each 2x2 pool window stacked on the leading axis.
    z0 = jnp.maximum(y_ref[0] * scale + shift, 0.0)
    z1 = jnp.maximum(y_ref[1] * scale + shift, 0.0)
    z2 = jnp.maximum(y_ref[2] * scale + shift, 0.0)
    z3 = jnp.maximum(y_ref[3] * scale + shift, 0.0)
    o_ref[...] = jnp.maximum(jnp.maximum(z0, z1), jnp.maximum(z2, z3))


def conv_block_forward(x_nchw, w_oihw, gamma, beta):
    N, Cin, H, W = x_nchw.shape
    Cout = w_oihw.shape[0]
    assert H % 2 == 0 and W % 2 == 0, "MaxPool2d(2,2) path assumes even spatial dims"
    Hh, Wh = H // 2, W // 2
    K = 9 * Cin
    P = N * Hh * Wh            # pooled positions
    M = 4 * P                  # conv-output rows (= N*H*W)
    Cp = _round_up(Cout, 128)  # lane-dense channel axis

    # ---- glue: im2col (feature order dy,dx,cin), pool-member-outermost row ordering ----
    x_nhwc = jnp.transpose(x_nchw, (0, 2, 3, 1)).astype(jnp.float32)
    xp = jnp.pad(x_nhwc, ((0, 0), (1, 1), (1, 1), (0, 0)))
    patches = jnp.concatenate(
        [xp[:, dy:dy + H, dx:dx + W, :] for dy in range(3) for dx in range(3)], axis=-1)
    patches = patches.reshape(N, Hh, 2, Wh, 2, K)
    # rows ordered (ph, pw, n, hh, ww): pool member q of pooled position p sits at row q*P + p
    patches = patches.transpose(2, 4, 0, 1, 3, 5).reshape(M, K)
    patches = patches.astype(jnp.bfloat16)                    # halve HBM traffic, feed MXU bf16

    w2d = jnp.transpose(w_oihw, (2, 3, 1, 0)).reshape(K, Cout).astype(jnp.float32)
    w2d = jnp.pad(w2d, ((0, 0), (0, Cp - Cout))).astype(jnp.bfloat16)
    gamma_p = jnp.pad(gamma.astype(jnp.float32).reshape(1, Cout), ((0, 0), (0, Cp - Cout)))
    beta_p = jnp.pad(beta.astype(jnp.float32).reshape(1, Cout), ((0, 0), (0, Cp - Cout)))

    # ---- kernel A: tiled conv matmul + per-channel sum / sum-of-squares ----
    TM = _pick_tile(M, (1024, 512, 256, 128, 64, 32, 16, 8))
    cost_a = pl.CostEstimate(
        flops=2 * M * K * Cp,
        transcendentals=0,
        bytes_accessed=M * K * 2 + K * Cp * 2 + M * Cp * 4 + 2 * Cp * 4)
    y, s_sum, s_sq = pl.pallas_call(
        conv_stats_kernel,
        out_shape=(
            jax.ShapeDtypeStruct((M, Cp), jnp.float32),
            jax.ShapeDtypeStruct((1, Cp), jnp.float32),
            jax.ShapeDtypeStruct((1, Cp), jnp.float32),
        ),
        grid=(M // TM,),
        in_specs=[
            pl.BlockSpec((TM, K), lambda i: (i, 0)),
            pl.BlockSpec((K, Cp), lambda i: (0, 0)),
        ],
        out_specs=(
            pl.BlockSpec((TM, Cp), lambda i: (i, 0)),
            pl.BlockSpec((1, Cp), lambda i: (0, 0)),   # resident accumulators
            pl.BlockSpec((1, Cp), lambda i: (0, 0)),
        ),
        compiler_params=pltpu.CompilerParams(
            dimension_semantics=("arbitrary",),        # stats accumulate across this axis
            vmem_limit_bytes=32 * 1024 * 1024),
        cost_estimate=cost_a,
    )(patches, w2d)

    # ---- kernel B: BN normalize + ReLU + 2x2 max pool, fused ----
    y4 = y.reshape(4, P, Cp)   # free contiguous view: pool-member axis already outermost in rows
    TP = _pick_tile(P, (512, 256, 128, 64, 32, 16, 8))
    kernel_b = functools.partial(bn_relu_pool_kernel, inv_m=1.0 / M, eps=BN_EPS)
    pooled = pl.pallas_call(
        kernel_b,
        out_shape=jax.ShapeDtypeStruct((P, Cp), jnp.float32),
        grid=(P // TP,),
        in_specs=[
            pl.BlockSpec((4, TP, Cp), lambda j: (0, j, 0)),
            pl.BlockSpec((1, Cp), lambda j: (0, 0)),
            pl.BlockSpec((1, Cp), lambda j: (0, 0)),
            pl.BlockSpec((1, Cp), lambda j: (0, 0)),
            pl.BlockSpec((1, Cp), lambda j: (0, 0)),
        ],
        out_specs=pl.BlockSpec((TP, Cp), lambda j: (j, 0)),
        compiler_params=pltpu.CompilerParams(
            dimension_semantics=("parallel",),
            vmem_limit_bytes=32 * 1024 * 1024),
    )(y4, s_sum, s_sq, gamma_p, beta_p)

    # ---- strip channel padding, back to NCHW ----
    # TODO(synk): PyTorch BatchNorm2d also updates running_mean/running_var in training; not modeled.
    return pooled[:, :Cout].reshape(N, Hh, Wh, Cout).transpose(0, 3, 1, 2)


def reference_forward(x, w, gamma, beta):
    y = jax.lax.conv_general_dilated(
        x, w, window_strides=(1, 1), padding="SAME",
        dimension_numbers=("NCHW", "OIHW", "NCHW"))
    mean = jnp.mean(y, axis=(0, 2, 3), keepdims=True)
    var = jnp.mean((y - mean) ** 2, axis=(0, 2, 3), keepdims=True)
    y = (y - mean) * jax.lax.rsqrt(var + BN_EPS)
    y = y * gamma.reshape(1, -1, 1, 1) + beta.reshape(1, -1, 1, 1)
    y = jnp.maximum(y, 0.0)
    N, C, H, W = y.shape
    return y.reshape(N, C, H // 2, 2, W // 2, 2).max(axis=(3, 5))


if __name__ == "__main__":
    key = jax.random.PRNGKey(0)
    k1, k2, k3, k4 = jax.random.split(key, 4)

    N, Cin, Cout, H, W = 2, 4, 8, 16, 16  # in_planes=4, out_planes=8
    x = jax.random.normal(k1, (N, Cin, H, W), jnp.float32)
    w = 0.1 * jax.random.normal(k2, (Cout, Cin, 3, 3), jnp.float32)   # Conv2d weight (OIHW), bias=False
    gamma = 1.0 + 0.1 * jax.random.normal(k3, (Cout,), jnp.float32)   # BN weight
    beta = 0.1 * jax.random.normal(k4, (Cout,), jnp.float32)          # BN bias

    out = jax.block_until_ready(jax.jit(conv_block_forward)(x, w, gamma, beta))
    assert out.shape == (N, Cout, H // 2, W // 2)

    ref = reference_forward(x, w, gamma, beta)
    # bf16 MXU inputs with f32 accumulation -> compare at a bf16-appropriate tolerance.
    if not jnp.allclose(out, ref, atol=2e-2, rtol=2e-2):
        err = float(jnp.max(jnp.abs(out - ref)))
        raise AssertionError(f"Pallas ConvBlock does not match reference (max abs err {err})")

    print("KERNEL_OK")
</pallas_src>

<mosaic_0001>
module attributes {stable_mosaic.version = 11 : i64} {
  func.func @conv_stats_kernel(%arg0: i32, %arg1: memref<256x36xbf16, #tpu.memory_space<vmem>>, %arg2: memref<36x128xbf16, #tpu.memory_space<vmem>>, %arg3: memref<256x128xf32, #tpu.memory_space<vmem>>, %arg4: memref<1x128xf32, #tpu.memory_space<vmem>>, %arg5: memref<1x128xf32, #tpu.memory_space<vmem>>) attributes {dimension_semantics = [#tpu.dimension_semantics<arbitrary>], iteration_bounds = array<i64: 2>, scalar_prefetch = 0 : i64, scratch_operands = 0 : i64, tpu.core_type = #tpu.core_type<tc>, window_params = [{transform_indices = @transform_0, window_bounds = array<i64: 256, 36>}, {pipeline_mode = #tpu.pipeline_mode<synchronous>, transform_indices = @transform_1, window_bounds = array<i64: 36, 128>}, {transform_indices = @transform_2, window_bounds = array<i64: 256, 128>}, {pipeline_mode = #tpu.pipeline_mode<synchronous>, transform_indices = @transform_3, window_bounds = array<i64: 1, 128>}, {pipeline_mode = #tpu.pipeline_mode<synchronous>, transform_indices = @transform_4, window_bounds = array<i64: 1, 128>}]} {
    %c0 = arith.constant 0 : index
    %c0_0 = arith.constant 0 : index
    %0 = vector.load %arg1[%c0, %c0_0] : memref<256x36xbf16, #tpu.memory_space<vmem>>, vector<256x36xbf16>
    %c0_1 = arith.constant 0 : index
    %c0_2 = arith.constant 0 : index
    %1 = vector.load %arg2[%c0_1, %c0_2] : memref<36x128xbf16, #tpu.memory_space<vmem>>, vector<36x128xbf16>
    %cst = arith.constant dense<0.000000e+00> : vector<256x128xf32>
    %2 = tpu.matmul %0, %1, %cst {dimension_numbers = #tpu.dot_dimension_numbers<[1], [0], [0], [1], [0, 0, 1, 1], [], []>} : vector<256x36xbf16>, vector<36x128xbf16>, vector<256x128xf32> -> vector<256x128xf32>
    %c0_3 = arith.constant 0 : index
    %c0_4 = arith.constant 0 : index
    %3 = vector.load %arg3[%c0_3, %c0_4] : memref<256x128xf32, #tpu.memory_space<vmem>>, vector<256x128xf32>
    tpu.vector_store %arg3[%c0_3, %c0_4], %2 {strides = array<i32>} : memref<256x128xf32, #tpu.memory_space<vmem>>, vector<256x128xf32>,
    %c0_i32 = arith.constant 0 : i32
    %4 = arith.cmpi eq, %arg0, %c0_i32 : i32
    %5 = arith.extui %4 : i1 to i32
    %c0_i32_5 = arith.constant 0 : i32
    %6 = arith.cmpi ne, %5, %c0_i32_5 : i32
    scf.if %6 {
      %cst_16 = arith.constant 0.000000e+00 : f32
      %18 = vector.broadcast %cst_16 : f32 to vector<1x128xf32>
      %c0_17 = arith.constant 0 : index
      %c0_18 = arith.constant 0 : index
      %19 = vector.load %arg4[%c0_17, %c0_18] : memref<1x128xf32, #tpu.memory_space<vmem>>, vector<1x128xf32>
      tpu.vector_store %arg4[%c0_17, %c0_18], %18 {strides = array<i32>} : memref<1x128xf32, #tpu.memory_space<vmem>>, vector<1x128xf32>,
      %cst_19 = arith.constant 0.000000e+00 : f32
      %20 = vector.broadcast %cst_19 : f32 to vector<1x128xf32>
      %c0_20 = arith.constant 0 : index
      %c0_21 = arith.constant 0 : index
      %21 = vector.load %arg5[%c0_20, %c0_21] : memref<1x128xf32, #tpu.memory_space<vmem>>, vector<1x128xf32>
      tpu.vector_store %arg5[%c0_20, %c0_21], %20 {strides = array<i32>} : memref<1x128xf32, #tpu.memory_space<vmem>>, vector<1x128xf32>,
    } else {
    }
    %c0_6 = arith.constant 0 : index
    %c0_7 = arith.constant 0 : index
    %7 = vector.load %arg4[%c0_6, %c0_7] : memref<1x128xf32, #tpu.memory_space<vmem>>, vector<1x128xf32>
    %cst_8 = arith.constant dense<0.000000e+00> : vector<128xf32>
    %8 = vector.multi_reduction <add>, %2, %cst_8 [0] : vector<256x128xf32> to vector<128xf32>
    %9 = vector.shape_cast %8 : vector<128xf32> to vector<1x128xf32>
    %10 = arith.addf %7, %9 : vector<1x128xf32>
    %c0_9 = arith.constant 0 : index
    %c0_10 = arith.constant 0 : index
    %11 = vector.load %arg4[%c0_9, %c0_10] : memref<1x128xf32, #tpu.memory_space<vmem>>, vector<1x128xf32>
    tpu.vector_store %arg4[%c0_9, %c0_10], %10 {strides = array<i32>} : memref<1x128xf32, #tpu.memory_space<vmem>>, vector<1x128xf32>,
    %c0_11 = arith.constant 0 : index
    %c0_12 = arith.constant 0 : index
    %12 = vector.load %arg5[%c0_11, %c0_12] : memref<1x128xf32, #tpu.memory_space<vmem>>, vector<1x128xf32>
    %13 = arith.mulf %2, %2 : vector<256x128xf32>
    %cst_13 = arith.constant dense<0.000000e+00> : vector<128xf32>
    %14 = vector.multi_reduction <add>, %13, %cst_13 [0] : vector<256x128xf32> to vector<128xf32>
    %15 = vector.shape_cast %14 : vector<128xf32> to vector<1x128xf32>
    %16 = arith.addf %12, %15 : vector<1x128xf32>
    %c0_14 = arith.constant 0 : index
    %c0_15 = arith.constant 0 : index
    %17 = vector.load %arg5[%c0_14, %c0_15] : memref<1x128xf32, #tpu.memory_space<vmem>>, vector<1x128xf32>
    tpu.vector_store %arg5[%c0_14, %c0_15], %16 {strides = array<i32>} : memref<1x128xf32, #tpu.memory_space<vmem>>, vector<1x128xf32>,
    return
  }
  func.func @transform_0(%arg0: i32) -> (i32, i32) {
    %c0_i32 = arith.constant 0 : i32
    %c0_i32_0 = arith.constant 0 : i32
    return %arg0, %c0_i32 : i32, i32
  }
  func.func @transform_1(%arg0: i32) -> (i32, i32) {
    %c0_i32 = arith.constant 0 : i32
    %c0_i32_0 = arith.constant 0 : i32
    %c0_i32_1 = arith.constant 0 : i32
    return %c0_i32, %c0_i32_0 : i32, i32
  }
  func.func @transform_2(%arg0: i32) -> (i32, i32) {
    %c0_i32 = arith.constant 0 : i32
    %c0_i32_0 = arith.constant 0 : i32
    return %arg0, %c0_i32 : i32, i32
  }
  func.func @transform_3(%arg0: i32) -> (i32, i32) {
    %c0_i32 = arith.constant 0 : i32
    %c0_i32_0 = arith.constant 0 : i32
    %c0_i32_1 = arith.constant 0 : i32
    return %c0_i32, %c0_i32_0 : i32, i32
  }
  func.func @transform_4(%arg0: i32) -> (i32, i32) {
    %c0_i32 = arith.constant 0 : i32
    %c0_i32_0 = arith.constant 0 : i32
    %c0_i32_1 = arith.constant 0 : i32
    return %c0_i32, %c0_i32_0 : i32, i32
  }
}

module attributes {stable_mosaic.version = 11 : i64} {
  func.func @bn_relu_pool_kernel(%arg0: i32, %arg1: memref<4x64x128xf32, #tpu.memory_space<vmem>>, %arg2: memref<1x128xf32, #tpu.memory_space<vmem>>, %arg3: memref<1x128xf32, #tpu.memory_space<vmem>>, %arg4: memref<1x128xf32, #tpu.memory_space<vmem>>, %arg5: memref<1x128xf32, #tpu.memory_space<vmem>>, %arg6: memref<64x128xf32, #tpu.memory_space<vmem>>) attributes {dimension_semantics = [#tpu.dimension_semantics<parallel>], iteration_bounds = array<i64: 2>, scalar_prefetch = 0 : i64, scratch_operands = 0 : i64, tpu.core_type = #tpu.core_type<tc>, window_params = [{transform_indices = @transform_0, window_bounds = array<i64: 4, 64, 128>}, {pipeline_mode = #tpu.pipeline_mode<synchronous>, transform_indices = @transform_1, window_bounds = array<i64: 1, 128>}, {pipeline_mode = #tpu.pipeline_mode<synchronous>, transform_indices = @transform_2, window_bounds = array<i64: 1, 128>}, {pipeline_mode = #tpu.pipeline_mode<synchronous>, transform_indices = @transform_3, window_bounds = array<i64: 1, 128>}, {pipeline_mode = #tpu.pipeline_mode<synchronous>, transform_indices = @transform_4, window_bounds = array<i64: 1, 128>}, {transform_indices = @transform_5, window_bounds = array<i64: 64, 128>}]} {
    %c0 = arith.constant 0 : index
    %c0_0 = arith.constant 0 : index
    %0 = vector.load %arg2[%c0, %c0_0] : memref<1x128xf32, #tpu.memory_space<vmem>>, vector<1x128xf32>
    %cst = arith.constant 0.001953125 : f32
    %1 = vector.broadcast %cst : f32 to vector<1x128xf32>
    %2 = arith.mulf %0, %1 : vector<1x128xf32>
    %c0_1 = arith.constant 0 : index
    %c0_2 = arith.constant 0 : index
    %3 = vector.load %arg3[%c0_1, %c0_2] : memref<1x128xf32, #tpu.memory_space<vmem>>, vector<1x128xf32>
    %cst_3 = arith.constant 0.001953125 : f32
    %4 = vector.broadcast %cst_3 : f32 to vector<1x128xf32>
    %5 = arith.mulf %3, %4 : vector<1x128xf32>
    %6 = arith.mulf %2, %2 : vector<1x128xf32>
    %7 = arith.subf %5, %6 : vector<1x128xf32>
    %c0_4 = arith.constant 0 : index
    %c0_5 = arith.constant 0 : index
    %8 = vector.load %arg4[%c0_4, %c0_5] : memref<1x128xf32, #tpu.memory_space<vmem>>, vector<1x128xf32>
    %cst_6 = arith.constant 9.99999974E-6 : f32
    %9 = vector.broadcast %cst_6 : f32 to vector<1x128xf32>
    %10 = arith.addf %7, %9 : vector<1x128xf32>
    %11 = math.rsqrt %10 : vector<1x128xf32>
    %12 = arith.mulf %8, %11 : vector<1x128xf32>
    %c0_7 = arith.constant 0 : index
    %c0_8 = arith.constant 0 : index
    %13 = vector.load %arg5[%c0_7, %c0_8] : memref<1x128xf32, #tpu.memory_space<vmem>>, vector<1x128xf32>
    %14 = arith.mulf %2, %12 : vector<1x128xf32>
    %15 = arith.subf %13, %14 : vector<1x128xf32>
    %c0_9 = arith.constant 0 : index
    %c0_10 = arith.constant 0 : index
    %c0_11 = arith.constant 0 : index
    %16 = vector.load %arg1[%c0_9, %c0_10, %c0_11] : memref<4x64x128xf32, #tpu.memory_space<vmem>>, vector<1x64x128xf32>
    %17 = vector.shape_cast %16 : vector<1x64x128xf32> to vector<64x128xf32>
    %18 = vector.broadcast %12 : vector<1x128xf32> to vector<64x128xf32>
    %19 = arith.mulf %17, %18 : vector<64x128xf32>
    %20 = vector.broadcast %15 : vector<1x128xf32> to vector<64x128xf32>
    %21 = arith.addf %19, %20 : vector<64x128xf32>
    %cst_12 = arith.constant 0.000000e+00 : f32
    %22 = vector.broadcast %cst_12 : f32 to vector<64x128xf32>
    %23 = arith.maximumf %21, %22 : vector<64x128xf32>
    %c1 = arith.constant 1 : index
    %c0_13 = arith.constant 0 : index
    %c0_14 = arith.constant 0 : index
    %24 = vector.load %arg1[%c1, %c0_13, %c0_14] : memref<4x64x128xf32, #tpu.memory_space<vmem>>, vector<1x64x128xf32>
    %25 = vector.shape_cast %24 : vector<1x64x128xf32> to vector<64x128xf32>
    %26 = vector.broadcast %12 : vector<1x128xf32> to vector<64x128xf32>
    %27 = arith.mulf %25, %26 : vector<64x128xf32>
    %28 = vector.broadcast %15 : vector<1x128xf32> to vector<64x128xf32>
    %29 = arith.addf %27, %28 : vector<64x128xf32>
    %cst_15 = arith.constant 0.000000e+00 : f32
    %30 = vector.broadcast %cst_15 : f32 to vector<64x128xf32>
    %31 = arith.maximumf %29, %30 : vector<64x128xf32>
    %c2 = arith.constant 2 : index
    %c0_16 = arith.constant 0 : index
    %c0_17 = arith.constant 0 : index
    %32 = vector.load %arg1[%c2, %c0_16, %c0_17] : memref<4x64x128xf32, #tpu.memory_space<vmem>>, vector<1x64x128xf32>
    %33 = vector.shape_cast %32 : vector<1x64x128xf32> to vector<64x128xf32>
    %34 = vector.broadcast %12 : vector<1x128xf32> to vector<64x128xf32>
    %35 = arith.mulf %33, %34 : vector<64x128xf32>
    %36 = vector.broadcast %15 : vector<1x128xf32> to vector<64x128xf32>
    %37 = arith.addf %35, %36 : vector<64x128xf32>
    %cst_18 = arith.constant 0.000000e+00 : f32
    %38 = vector.broadcast %cst_18 : f32 to vector<64x128xf32>
    %39 = arith.maximumf %37, %38 : vector<64x128xf32>
    %c3 = arith.constant 3 : index
    %c0_19 = arith.constant 0 : index
    %c0_20 = arith.constant 0 : index
    %40 = vector.load %arg1[%c3, %c0_19, %c0_20] : memref<4x64x128xf32, #tpu.memory_space<vmem>>, vector<1x64x128xf32>
    %41 = vector.shape_cast %40 : vector<1x64x128xf32> to vector<64x128xf32>
    %42 = vector.broadcast %12 : vector<1x128xf32> to vector<64x128xf32>
    %43 = arith.mulf %41, %42 : vector<64x128xf32>
    %44 = vector.broadcast %15 : vector<1x128xf32> to vector<64x128xf32>
    %45 = arith.addf %43, %44 : vector<64x128xf32>
    %cst_21 = arith.constant 0.000000e+00 : f32
    %46 = vector.broadcast %cst_21 : f32 to vector<64x128xf32>
    %47 = arith.maximumf %45, %46 : vector<64x128xf32>
    %48 = arith.maximumf %23, %31 : vector<64x128xf32>
    %49 = arith.maximumf %39, %47 : vector<64x128xf32>
    %50 = arith.maximumf %48, %49 : vector<64x128xf32>
    %c0_22 = arith.constant 0 : index
    %c0_23 = arith.constant 0 : index
    %51 = vector.load %arg6[%c0_22, %c0_23] : memref<64x128xf32, #tpu.memory_space<vmem>>, vector<64x128xf32>
    tpu.vector_store %arg6[%c0_22, %c0_23], %50 {strides = array<i32>} : memref<64x128xf32, #tpu.memory_space<vmem>>, vector<64x128xf32>,
    return
  }
  func.func @transform_0(%arg0: i32) -> (i32, i32, i32) {
    %c0_i32 = arith.constant 0 : i32
    %c0_i32_0 = arith.constant 0 : i32
    %c0_i32_1 = arith.constant 0 : i32
    return %c0_i32, %arg0, %c0_i32_0 : i32, i32, i32
  }
  func.func @transform_1(%arg0: i32) -> (i32, i32) {
    %c0_i32 = arith.constant 0 : i32
    %c0_i32_0 = arith.constant 0 : i32
    %c0_i32_1 = arith.constant 0 : i32
    return %c0_i32, %c0_i32_0 : i32, i32
  }
  func.func @transform_2(%arg0: i32) -> (i32, i32) {
    %c0_i32 = arith.constant 0 : i32
    %c0_i32_0 = arith.constant 0 : i32
    %c0_i32_1 = arith.constant 0 : i32
    return %c0_i32, %c0_i32_0 : i32, i32
  }
  func.func @transform_3(%arg0: i32) -> (i32, i32) {
    %c0_i32 = arith.constant 0 : i32
    %c0_i32_0 = arith.constant 0 : i32
    %c0_i32_1 = arith.constant 0 : i32
    return %c0_i32, %c0_i32_0 : i32, i32
  }
  func.func @transform_4(%arg0: i32) -> (i32, i32) {
    %c0_i32 = arith.constant 0 : i32
    %c0_i32_0 = arith.constant 0 : i32
    %c0_i32_1 = arith.constant 0 : i32
    return %c0_i32, %c0_i32_0 : i32, i32
  }
  func.func @transform_5(%arg0: i32) -> (i32, i32) {
    %c0_i32 = arith.constant 0 : i32
    %c0_i32_0 = arith.constant 0 : i32
    return %arg0, %c0_i32 : i32, i32
  }
}

</mosaic_0001>

<llo_original>
// kernel: conv_block_forward.3
$region0: #{conv_block_forward.3}
  #allocation0 [shape = 'u32[]', space=smem, size = 0x4, offset = 0x4, fixed_abs, tag = 'smem constant byte address 0x4 - core index']
  #allocation1 [shape = 'u32[144,128]{1,0:T(1,128)}', space=vmem, size = 0x12000, scoped, tag = 'internal scratch']
  %s0 = inlined_call_operand.vmem [shape: f32[4,128,128], index: 0, kind: input, shape index: {}]
  %s1 = inlined_call_operand.vmem [shape: f32[1,128], index: 1, kind: input, shape index: {}]
  %s2 = inlined_call_operand.vmem [shape: f32[1,128], index: 2, kind: input, shape index: {}]
  %s3 = inlined_call_operand.vmem [shape: f32[1,128], index: 3, kind: input, shape index: {}]
  %s4 = inlined_call_operand.vmem [shape: f32[1,128], index: 4, kind: input, shape index: {}]
  %s5 = inlined_call_operand.vmem [shape: f32[128,128], index: 5, kind: output, shape index: {}]
  %s6 = sld [smem:[#allocation0]]
  $region91: #{conv_block_forward.3} parent=0
    _
  %s8 = ssub.s32 1, %s6
  %s9 = scalar_select 0, %s8, %s6
  $region1: #{conv_block_forward.3} parent=0
    #allocation2 [shape = 'u8[262144]{0}', space=vmem, size = 0x40000, scoped, tag = 'input window, operand 0']
    loop: start=0, step=1, limit=4
    $region2: #{conv_block_forward.3} parent=1 // loop_pre_header
      _
    $region3: #{conv_block_forward.3} parent=1 // loop_header
      %s11 = sphi 0, %s15
      %p12 = scmp.ge.s32.totalorder %s11, 4
      %s21 = sphi 0, %s23
      %s24 = sphi 0, %s21
      %s25 = sphi 0, %s24
      %s41 = sphi 0, %s25
      %s45 = sphi 0, %s45
      %s47 = sphi 0, %s45
      %s48 = sphi 0, %s47
      %s62 = sphi 0, %s48
      %s66 = sphi 0, %s66
      %s68 = sphi 0, %s66
      %s69 = sphi 0, %s68
      %s83 = sphi 0, %s69
      %s87 = sphi 0, %s87
      %s89 = sphi 0, %s87
      %s90 = sphi 0, %s89
      %s104 = sphi 0, %s90
      %s108 = sphi 0, %s108
      %s110 = sphi 0, %s108
      %s111 = sphi 0, %s110
      %s125 = sphi 0, %s111
      %s131 = sphi 0, %s133
      %s134 = sphi 0, %s131
      %s135 = sphi 0, %s134
      %s151 = sphi 0, %s135
    $region4: #{conv_block_forward.3} parent=1 // loop_header_branch
      %14 = sbr.rel (%p12) target = $region8
    $region5: #{conv_block_forward.3} parent=1 // loop_body
      %s16 = ssub.s32 %s11, 1
      %s17 = ssub.s32 %s11, 2
      %s18 = sadd.s32 %s11, 1
      %s19 = ssub.s32 %s11, %s18
      %p20 = scmp.eq.s32.totalorder %s19, 0
      %s22 = sadd.s32 %s21, 1
      %s23 = scalar_select %p20, %s21, %s22
      %p26 = pneg %p20
      %p27 = scmp.eq.s32.totalorder %s11, 1
      %p28 = por %p26, %p27
      %p29 = scmp.ne.s32.totalorder %s21, %s24
      %p30 = scmp.eq.s32.totalorder %s11, 0
      %p31 = por %p29, %p30
      %p32 = scmp.ne.s32.totalorder %s21, %s24
      %p33 = scmp.eq.s32.totalorder %s16, 1
      %p34 = por %p32, %p33
      %p35 = scmp.ne.s32.totalorder %s24, %s25
      %p36 = scmp.eq.s32.totalorder %s16, 0
      %p37 = por %p35, %p36
      %p38 = scmp.ne.s32.totalorder %s24, %s25
      %p39 = scmp.eq.s32.totalorder %s17, 1
      %p40 = por %p38, %p39
      %p42 = scmp.ne.s32.totalorder %s25, %s41
      %p43 = scmp.eq.s32.totalorder %s17, 0
      %p44 = por %p42, %p43
      %s46 = sadd.s32 %s45, 1
      %p49 = scmp.eq.s32.totalorder %s11, 1
      %p50 = scmp.ne.s32.totalorder %s45, %s47
      %p51 = scmp.eq.s32.totalorder %s11, 0
      %p52 = por %p50, %p51
      %p53 = scmp.ne.s32.totalorder %s45, %s47
      %p54 = scmp.eq.s32.totalorder %s16, 1
      %p55 = por %p53, %p54
      %p56 = scmp.ne.s32.totalorder %s47, %s48
      %p57 = scmp.eq.s32.totalorder %s16, 0
      %p58 = por %p56, %p57
      %p59 = scmp.ne.s32.totalorder %s47, %s48
      %p60 = scmp.eq.s32.totalorder %s17, 1
      %p61 = por %p59, %p60
      %p63 = scmp.ne.s32.totalorder %s48, %s62
      %p64 = scmp.eq.s32.totalorder %s17, 0
      %p65 = por %p63, %p64
      %s67 = sadd.s32 %s66, 1
      %p70 = scmp.eq.s32.totalorder %s11, 1
      %p71 = scmp.ne.s32.totalorder %s66, %s68
      %p72 = scmp.eq.s32.totalorder %s11, 0
      %p73 = por %p71, %p72
      %p74 = scmp.ne.s32.totalorder %s66, %s68
      %p75 = scmp.eq.s32.totalorder %s16, 1
      %p76 = por %p74, %p75
      %p77 = scmp.ne.s32.totalorder %s68, %s69
      %p78 = scmp.eq.s32.totalorder %s16, 0
      %p79 = por %p77, %p78
      %p80 = scmp.ne.s32.totalorder %s68, %s69
      %p81 = scmp.eq.s32.totalorder %s17, 1
      %p82 = por %p80, %p81
      %p84 = scmp.ne.s32.totalorder %s69, %s83
      %p85 = scmp.eq.s32.totalorder %s17, 0
      %p86 = por %p84, %p85
      %s88 = sadd.s32 %s87, 1
      %p91 = scmp.eq.s32.totalorder %s11, 1
      %p92 = scmp.ne.s32.totalorder %s87, %s89
      %p93 = scmp.eq.s32.totalorder %s11, 0
      %p94 = por %p92, %p93
      %p95 = scmp.ne.s32.totalorder %s87, %s89
      %p96 = scmp.eq.s32.totalorder %s16, 1
      %p97 = por %p95, %p96
      %p98 = scmp.ne.s32.totalorder %s89, %s90
      %p99 = scmp.eq.s32.totalorder %s16, 0
      %p100 = por %p98, %p99
      %p101 = scmp.ne.s32.totalorder %s89, %s90
      %p102 = scmp.eq.s32.totalorder %s17, 1
      %p103 = por %p101, %p102
      %p105 = scmp.ne.s32.totalorder %s90, %s104
      %p106 = scmp.eq.s32.totalorder %s17, 0
      %p107 = por %p105, %p106
      %s109 = sadd.s32 %s108, 1
      %p112 = scmp.eq.s32.totalorder %s11, 1
      %p113 = scmp.ne.s32.totalorder %s108, %s110
      %p114 = scmp.eq.s32.totalorder %s11, 0
      %p115 = por %p113, %p114
      %p116 = scmp.ne.s32.totalorder %s108, %s110
      %p117 = scmp.eq.s32.totalorder %s16, 1
      %p118 = por %p116, %p117
      %p119 = scmp.ne.s32.totalorder %s110, %s111
      %p120 = scmp.eq.s32.totalorder %s16, 0
      %p121 = por %p119, %p120
      %p122 = scmp.ne.s32.totalorder %s110, %s111
      %p123 = scmp.eq.s32.totalorder %s17, 1
      %p124 = por %p122, %p123
      %p126 = scmp.ne.s32.totalorder %s111, %s125
      %p127 = scmp.eq.s32.totalorder %s17, 0
      %p128 = por %p126, %p127
      %s129 = ssub.s32 %s11, %s18
      %p130 = scmp.eq.s32.totalorder %s129, 0
      %s132 = sadd.s32 %s131, 1
      %s133 = scalar_select %p130, %s131, %s132
      %p136 = pneg %p130
      %p137 = scmp.eq.s32.totalorder %s11, 1
      %p138 = por %p136, %p137
      %p139 = scmp.ne.s32.totalorder %s131, %s134
      %p140 = scmp.eq.s32.totalorder %s11, 0
      %p141 = por %p139, %p140
      %p142 = scmp.ne.s32.totalorder %s131, %s134
      %p143 = scmp.eq.s32.totalorder %s16, 1
      %p144 = por %p142, %p143
      %p145 = scmp.ne.s32.totalorder %s134, %s135
      %p146 = scmp.eq.s32.totalorder %s16, 0
      %p147 = por %p145, %p146
      %p148 = scmp.ne.s32.totalorder %s134, %s135
      %p149 = scmp.eq.s32.totalorder %s17, 1
      %p150 = por %p148, %p149
      %p152 = scmp.ne.s32.totalorder %s135, %s151
      %p153 = scmp.eq.s32.totalorder %s17, 0
      %p154 = por %p152, %p153
      %p155 = scmp.le.s32.totalorder 1, %s11
      %p156 = scmp.lt.s32.totalorder %s11, 3
      %p157 = pnand %p155, %p156
      %p158 = pneg %p157
      // Predicated region
      $region9: #{conv_block_forward.3} parent=5 // pred_check
        _
      $region10: #{conv_block_forward.3} parent=5 // pred_check_branch
        %160 = sbr.rel (%p157) target = $region12
      $region11: #{conv_block_forward.3} parent=5 // pred_region
        %s161 = ssub.s32 %s11, 1
        // Predicated region
        $region13: #{conv_block_forward.3} parent=11 // pred_check
          %p162 = pneg %p58
        $region14: #{conv_block_forward.3} parent=11 // pred_check_branch
          %164 = sbr.rel (%p162) target = $region16
        $region15: #{conv_block_forward.3} parent=11 // pred_region
          _
        $region16: #{conv_block_forward.3} parent=11 // pred_fallthru
          _
        // Predicated region
        $region17: #{conv_block_forward.3} parent=11 // pred_check
          %p165 = pneg %p79
        $region18: #{conv_block_forward.3} parent=11 // pred_check_branch
          %167 = sbr.rel (%p165) target = $region20
        $region19: #{conv_block_forward.3} parent=11 // pred_region
          _
        $region20: #{conv_block_forward.3} parent=11 // pred_fallthru
          _
        // Predicated region
        $region21: #{conv_block_forward.3} parent=11 // pred_check
          %p168 = pneg %p100
        $region22: #{conv_block_forward.3} parent=11 // pred_check_branch
          %170 = sbr.rel (%p168) target = $region24
        $region23: #{conv_block_forward.3} parent=11 // pred_region
          _
        $region24: #{conv_block_forward.3} parent=11 // pred_fallthru
          _
        // Predicated region
        $region25: #{conv_block_forward.3} parent=11 // pred_check
          %p171 = pneg %p121
        $region26: #{conv_block_forward.3} parent=11 // pred_check_branch
          %173 = sbr.rel (%p171) target = $region28
        $region27: #{conv_block_forward.3} parent=11 // pred_region
          _
        $region28: #{conv_block_forward.3} parent=11 // pred_fallthru
          _
      $region12: #{conv_block_forward.3} parent=5 // pred_fallthru
        _
      %p174 = scmp.lt.s32.totalorder %s11, 2
      // Predicated region
      $region29: #{conv_block_forward.3} parent=5 // pred_check
        %p175 = pneg %p174
      $region30: #{conv_block_forward.3} parent=5 // pred_check_branch
        %177 = sbr.rel (%p175) target = $region32
      $region31: #{conv_block_forward.3} parent=5 // pred_region
        // Predicated region
        $region33: #{conv_block_forward.3} parent=31 // pred_check
          %p178 = pneg %p31
        $region34: #{conv_block_forward.3} parent=31 // pred_check_branch
          %180 = sbr.rel (%p178) target = $region36
        $region35: #{conv_block_forward.3} parent=31 // pred_region
          %s181 = sand.u32 %s21, 1
          %s182 = sand.u32 %s21, 1
          %s183 = smul.addr %s182, 256
          %s184 = scalar_lea.vmem [#allocation2], %s183
          %s185 = smul.u32 8, %s11
          %s186 = smul.addr %s185, 8
          %s187 = scalar_lea.vmem %s0, %s186
          // Predicated region
          $region37: #{conv_block_forward.3} parent=35 // pred_check
            _
          $region38: #{conv_block_forward.3} parent=35 // pred_check_branch
            %189 = sbr.rel (0) target = $region40
          $region39: #{conv_block_forward.3} parent=35 // pred_region
            // Predicated region
            $region41: #{conv_block_forward.3} parent=39 // pred_check
              _
            $region42: #{conv_block_forward.3} parent=39 // pred_check_branch
              %191 = sbr.rel (0) target = $region44
            $region43: #{conv_block_forward.3} parent=39 // pred_region
              // Predicated region
              $region56: #{conv_block_forward.3} parent=43 // pred_check
                _
              $region57: #{conv_block_forward.3} parent=43 // pred_check_branch
                %268 = sbr.rel (0) target = $region59
              $region58: #{conv_block_forward.3} parent=43 // pred_region
                loop: start=0, step=1, limit=1
                $region60: #{conv_block_forward.3} parent=58 // loop_pre_header
                  _
                $region61: #{conv_block_forward.3} parent=58 // loop_header
                  %s270 = sphi 0, %s274
                  %p271 = scmp.ge.s32.totalorder %s270, 1
                  %s275 = sphi %s187, %s187
                  %s276 = sphi %s184, %s184
                $region62: #{conv_block_forward.3} parent=58 // loop_header_branch
                  %273 = sbr.rel (%p271) target = $region66
                $region63: #{conv_block_forward.3} parent=58 // loop_body
                  %v277 = vld [vmem:[%s275] sm:$0xff]
                  %278 = vst [vmem:[%s276] sm:$0xff] %v277
                  %v279 = vld [vmem:[%s275 + $0x8] sm:$0xff]
                  %280 = vst [vmem:[%s276 + $0x8] sm:$0xff] %v279
                  %v281 = vld [vmem:[%s275 + $0x10] sm:$0xff]
                  %282 = vst [vmem:[%s276 + $0x10] sm:$0xff] %v281
                  %v283 = vld [vmem:[%s275 + $0x18] sm:$0xff]
                  %284 = vst [vmem:[%s276 + $0x18] sm:$0xff] %v283
                  %v285 = vld [vmem:[%s275 + $0x20] sm:$0xff]
                  %286 = vst [vmem:[%s276 + $0x20] sm:$0xff] %v285
                  %v287 = vld [vmem:[%s275 + $0x28] sm:$0xff]
                  %288 = vst [vmem:[%s276 + $0x28] sm:$0xff] %v287
                  %v289 = vld [vmem:[%s275 + $0x30] sm:$0xff]
                  %290 = vst [vmem:[%s276 + $0x30] sm:$0xff] %v289
                  %v291 = vld [vmem:[%s275 + $0x38] sm:$0xff]
                  %292 = vst [vmem:[%s276 + $0x38] sm:$0xff] %v291
                  %v293 = vld [vmem:[%s275 + $0x80] sm:$0xff]
                  %294 = vst [vmem:[%s276 + $0x40] sm:$0xff] %v293
                  %v295 = vld [vmem:[%s275 + $0x88] sm:$0xff]
                  %296 = vst [vmem:[%s276 + $0x48] sm:$0xff] %v295
                  %v297 = vld [vmem:[%s275 + $0x90] sm:$0xff]
                  %298 = vst [vmem:[%s276 + $0x50] sm:$0xff] %v297
                  %v299 = vld [vmem:[%s275 + $0x98] sm:$0xff]
                  %300 = vst [vmem:[%s276 + $0x58] sm:$0xff] %v299
                  %v301 = vld [vmem:[%s275 + $0xa0] sm:$0xff]
                  %302 = vst [vmem:[%s276 + $0x60] sm:$0xff] %v301
                  %v303 = vld [vmem:[%s275 + $0xa8] sm:$0xff]
                  %304 = vst [vmem:[%s276 + $0x68] sm:$0xff] %v303
                  %v305 = vld [vmem:[%s275 + $0xb0] sm:$0xff]
                  %306 = vst [vmem:[%s276 + $0x70] sm:$0xff] %v305
                  %v307 = vld [vmem:[%s275 + $0xb8] sm:$0xff]
                  %308 = vst [vmem:[%s276 + $0x78] sm:$0xff] %v307
                  %v309 = vld [vmem:[%s275 + $0x100] sm:$0xff]
                  %310 = vst [vmem:[%s276 + $0x80] sm:$0xff] %v309
                  %v311 = vld [vmem:[%s275 + $0x108] sm:$0xff]
                  %312 = vst [vmem:[%s276 + $0x88] sm:$0xff] %v311
                  %v313 = vld [vmem:[%s275 + $0x110] sm:$0xff]
                  %314 = vst [vmem:[%s276 + $0x90] sm:$0xff] %v313
                  %v315 = vld [vmem:[%s275 + $0x118] sm:$0xff]
                  %316 = vst [vmem:[%s276 + $0x98] sm:$0xff] %v315
                  %v317 = vld [vmem:[%s275 + $0x120] sm:$0xff]
                  %318 = vst [vmem:[%s276 + $0xa0] sm:$0xff] %v317
                  %v319 = vld [vmem:[%s275 + $0x128] sm:$0xff]
                  %320 = vst [vmem:[%s276 + $0xa8] sm:$0xff] %v319
                  %v321 = vld [vmem:[%s275 + $0x130] sm:$0xff]
                  %322 = vst [vmem:[%s276 + $0xb0] sm:$0xff] %v321
                  %v323 = vld [vmem:[%s275 + $0x138] sm:$0xff]
                  %324 = vst [vmem:[%s276 + $0xb8] sm:$0xff] %v323
                  %v325 = vld [vmem:[%s275 + $0x180] sm:$0xff]
                  %326 = vst [vmem:[%s276 + $0xc0] sm:$0xff] %v325
                  %v327 = vld [vmem:[%s275 + $0x188] sm:$0xff]
                  %328 = vst [vmem:[%s276 + $0xc8] sm:$0xff] %v327
                  %v329 = vld [vmem:[%s275 + $0x190] sm:$0xff]
                  %330 = vst [vmem:[%s276 + $0xd0] sm:$0xff] %v329
                  %v331 = vld [vmem:[%s275 + $0x198] sm:$0xff]
                  %332 = vst [vmem:[%s276 + $0xd8] sm:$0xff] %v331
                  %v333 = vld [vmem:[%s275 + $0x1a0] sm:$0xff]
                  %334 = vst [vmem:[%s276 + $0xe0] sm:$0xff] %v333
                  %v335 = vld [vmem:[%s275 + $0x1a8] sm:$0xff]
                  %336 = vst [vmem:[%s276 + $0xe8] sm:$0xff] %v335
                  %v337 = vld [vmem:[%s275 + $0x1b0] sm:$0xff]
                  %338 = vst [vmem:[%s276 + $0xf0] sm:$0xff] %v337
                  %v339 = vld [vmem:[%s275 + $0x1b8] sm:$0xff]
                  %340 = vst [vmem:[%s276 + $0xf8] sm:$0xff] %v339
                $region64: #{conv_block_forward.3} parent=58 // loop_footer
                  %s274 = sadd.s32 1, %s270
                $region65: #{conv_block_forward.3} parent=58 // loop_footer_branch
                  %269 = sbr.rel target = $region61
                $region66: #{conv_block_forward.3} parent=58 // loop_exit
                  _
              $region59: #{conv_block_forward.3} parent=43 // pred_fallthru
                _
              // Predicated region
              $region67: #{conv_block_forward.3} parent=43 // pred_check
                _
              $region68: #{conv_block_forward.3} parent=43 // pred_check_branch
                %342 = sbr.rel target = $region70
              $region69: #{conv_block_forward.3} parent=43 // pred_region
                _
              $region70: #{conv_block_forward.3} parent=43 // pred_fallthru
                _
            $region44: #{conv_block_forward.3} parent=39 // pred_fallthru
              _
            // Predicated region
            $region45: #{conv_block_forward.3} parent=39 // pred_check
              _
            $region46: #{conv_block_forward.3} parent=39 // pred_check_branch
              %193 = sbr.rel target = $region48
            $region47: #{conv_block_forward.3} parent=39 // pred_region
              loop: start=0, step=1, limit=1
              $region49: #{conv_block_forward.3} parent=47 // loop_pre_header
                _
              $region50: #{conv_block_forward.3} parent=47 // loop_header
                %s196 = sphi 0, %s200
                %p197 = scmp.ge.s32.totalorder %s196, 1
                %s201 = sphi %s187, %s187
                %s202 = sphi %s184, %s184
              $region51: #{conv_block_forward.3} parent=47 // loop_header_branch
                %199 = sbr.rel (%p197) target = $region55
              $region52: #{conv_block_forward.3} parent=47 // loop_body
                %v203 = vld [vmem:[%s201] sm:$0xff]
                %204 = vst [vmem:[%s202] sm:$0xff] %v203
                %v205 = vld [vmem:[%s201 + $0x8] sm:$0xff]
                %206 = vst [vmem:[%s202 + $0x8] sm:$0xff] %v205
                %v207 = vld [vmem:[%s201 + $0x10] sm:$0xff]
                %208 = vst [vmem:[%s202 + $0x10] sm:$0xff] %v207
                %v209 = vld [vmem:[%s201 + $0x18] sm:$0xff]
                %210 = vst [vmem:[%s202 + $0x18] sm:$0xff] %v209
                %v211 = vld [vmem:[%s201 + $0x20] sm:$0xff]
                %212 = vst [vmem:[%s202 + $0x20] sm:$0xff] %v211
                %v213 = vld [vmem:[%s201 + $0x28] sm:$0xff]
                %214 = vst [vmem:[%s202 + $0x28] sm:$0xff] %v213
                %v215 = vld [vmem:[%s201 + $0x30] sm:$0xff]
                %216 = vst [vmem:[%s202 + $0x30] sm:$0xff] %v215
                %v217 = vld [vmem:[%s201 + $0x38] sm:$0xff]
                %218 = vst [vmem:[%s202 + $0x38] sm:$0xff] %v217
                %v219 = vld [vmem:[%s201 + $0x80] sm:$0xff]
                %220 = vst [vmem:[%s202 + $0x40] sm:$0xff] %v219
                %v221 = vld [vmem:[%s201 + $0x88] sm:$0xff]
                %222 = vst [vmem:[%s202 + $0x48] sm:$0xff] %v221
                %v223 = vld [vmem:[%s201 + $0x90] sm:$0xff]
                %224 = vst [vmem:[%s202 + $0x50] sm:$0xff] %v223
                %v225 = vld [vmem:[%s201 + $0x98] sm:$0xff]
                %226 = vst [vmem:[%s202 + $0x58] sm:$0xff] %v225
                %v227 = vld [vmem:[%s201 + $0xa0] sm:$0xff]
                %228 = vst [vmem:[%s202 + $0x60] sm:$0xff] %v227
                %v229 = vld [vmem:[%s201 + $0xa8] sm:$0xff]
                %230 = vst [vmem:[%s202 + $0x68] sm:$0xff] %v229
                %v231 = vld [vmem:[%s201 + $0xb0] sm:$0xff]
                %232 = vst [vmem:[%s202 + $0x70] sm:$0xff] %v231
                %v233 = vld [vmem:[%s201 + $0xb8] sm:$0xff]
                %234 = vst [vmem:[%s202 + $0x78] sm:$0xff] %v233
                %v235 = vld [vmem:[%s201 + $0x100] sm:$0xff]
                %236 = vst [vmem:[%s202 + $0x80] sm:$0xff] %v235
                %v237 = vld [vmem:[%s201 + $0x108] sm:$0xff]
                %238 = vst [vmem:[%s202 + $0x88] sm:$0xff] %v237
                %v239 = vld [vmem:[%s201 + $0x110] sm:$0xff]
                %240 = vst [vmem:[%s202 + $0x90] sm:$0xff] %v239
                %v241 = vld [vmem:[%s201 + $0x118] sm:$0xff]
                %242 = vst [vmem:[%s202 + $0x98] sm:$0xff] %v241
                %v243 = vld [vmem:[%s201 + $0x120] sm:$0xff]
                %244 = vst [vmem:[%s202 + $0xa0] sm:$0xff] %v243
                %v245 = vld [vmem:[%s201 + $0x128] sm:$0xff]
                %246 = vst [vmem:[%s202 + $0xa8] sm:$0xff] %v245
                %v247 = vld [vmem:[%s201 + $0x130] sm:$0xff]
                %248 = vst [vmem:[%s202 + $0xb0] sm:$0xff] %v247
                %v249 = vld [vmem:[%s201 + $0x138] sm:$0xff]
                %250 = vst [vmem:[%s202 + $0xb8] sm:$0xff] %v249
                %v251 = vld [vmem:[%s201 + $0x180] sm:$0xff]
                %252 = vst [vmem:[%s202 + $0xc0] sm:$0xff] %v251
                %v253 = vld [vmem:[%s201 + $0x188] sm:$0xff]
                %254 = vst [vmem:[%s202 + $0xc8] sm:$0xff] %v253
                %v255 = vld [vmem:[%s201 + $0x190] sm:$0xff]
                %256 = vst [vmem:[%s202 + $0xd0] sm:$0xff] %v255
                %v257 = vld [vmem:[%s201 + $0x198] sm:$0xff]
                %258 = vst [vmem:[%s202 + $0xd8] sm:$0xff] %v257
                %v259 = vld [vmem:[%s201 + $0x1a0] sm:$0xff]
                %260 = vst [vmem:[%s202 + $0xe0] sm:$0xff] %v259
                %v261 = vld [vmem:[%s201 + $0x1a8] sm:$0xff]
                %262 = vst [vmem:[%s202 + $0xe8] sm:$0xff] %v261
                %v263 = vld [vmem:[%s201 + $0x1b0] sm:$0xff]
                %264 = vst [vmem:[%s202 + $0xf0] sm:$0xff] %v263
                %v265 = vld [vmem:[%s201 + $0x1b8] sm:$0xff]
                %266 = vst [vmem:[%s202 + $0xf8] sm:$0xff] %v265
              $region53: #{conv_block_forward.3} parent=47 // loop_footer
                %s200 = sadd.s32 1, %s196
              $region54: #{conv_block_forward.3} parent=47 // loop_footer_branch
                %195 = sbr.rel target = $region50
              $region55: #{conv_block_forward.3} parent=47 // loop_exit
                _
            $region48: #{conv_block_forward.3} parent=39 // pred_fallthru
              _
          $region40: #{conv_block_forward.3} parent=35 // pred_fallthru
            _
          %343 = vnop
        $region36: #{conv_block_forward.3} parent=31 // pred_fallthru
          _
      $region32: #{conv_block_forward.3} parent=5 // pred_fallthru
        _
      %p344 = scmp.le.s32.totalorder 1, %s11
      %p345 = scmp.lt.s32.totalorder %s11, 3
      %p346 = pnand %p344, %p345
      %p347 = pneg %p346
      // Predicated region
      $region71: #{conv_block_forward.3} parent=5 // pred_check
        _
      $region72: #{conv_block_forward.3} parent=5 // pred_check_branch
        %349 = sbr.rel (%p346) target = $region74
      $region73: #{conv_block_forward.3} parent=5 // pred_region
        %s350 = ssub.s32 %s11, 1
        %s351 = sand.u32 %s24, 1
        %s352 = sand.u32 %s24, 1
        %s353 = smul.addr %s352, 256
        %s354 = scalar_lea.vmem [#allocation2], %s353
        // Predicated region
        $region75: #{conv_block_forward.3} parent=73 // pred_check
          %p355 = pneg %p37
        $region76: #{conv_block_forward.3} parent=73 // pred_check_branch
          %357 = sbr.rel (%p355) target = $region78
        $region77: #{conv_block_forward.3} parent=73 // pred_region
          _
        $region78: #{conv_block_forward.3} parent=73 // pred_fallthru
          _
        %s358 = sand.u32 %s24, 1
        %s359 = sand.u32 %s24, 1
        %s360 = smul.addr %s359, 256
        %s361 = scalar_lea.vmem [#allocation2], %s360
        %p362 = pneg %p37
        %p363 = pneg %p34
        %p364 = pneg %p58
        %p365 = pneg %p55
        %p366 = pneg %p79
        %p367 = pneg %p76
        %p368 = pneg %p100
        %p369 = pneg %p97
        %p370 = pneg %p121
        %p371 = pneg %p118
        %p372 = pneg %p147
        %p373 = pneg %p144
        %s374 = smul.u32 8, %s16
        %p375 = scmp.lt.s32.totalorder %s374, 15
        %s376 = scalar_select %p375, %s374, 15
        %s377 = smul.addr %s376, 8
        %s378 = scalar_lea.vmem %s5, %s377
        %s379 = smul.u32 8, %s16
        %s380 = smul.u32 8, %s16
        %p381 = scmp.lt.s32.totalorder %s380, 15
        %s382 = scalar_select %p381, %s380, 15
        %s383 = smul.addr %s382, 8
        %s384 = scalar_lea.vmem %s5, %s383
        %s385 = smul.u32 8, %s16
        %v386 = vld [vmem:[%s1] sm:$0x1]
        %v387 = vmul.f32 %v386, 0.001953125
        %v388 = vld [vmem:[%s2] sm:$0x1]
        %v389 = vmul.f32 %v388, 0.001953125
        %v390 = vmul.f32 %v387, %v387
        %v391 = vsub.f32 %v389, %v390
        %v392 = vld [vmem:[%s3] sm:$0x1]
        %v393 = vadd.f32 %v391, 1e-05
        %v394 = vrsqrt.pop %v393
        %v395 = vmul.f32 %v392, %v394
        %v396 = vld [vmem:[%s4] sm:$0x1]
        %v397 = vmul.f32 %v387, %v395
        %v398 = vsub.f32 %v396, %v397
        %v399 = vld [vmem:[%s354] sm:$0xff]
        %v400 = vld [vmem:[%s354 + $0x8] sm:$0xff]
        %v401 = vld [vmem:[%s354 + $0x10] sm:$0xff]
        %v402 = vld [vmem:[%s354 + $0x18] sm:$0xff]
        %v403 = vld [vmem:[%s354 + $0x20] sm:$0xff]
        %v404 = vld [vmem:[%s354 + $0x28] sm:$0xff]
        %v405 = vld [vmem:[%s354 + $0x30] sm:$0xff]
        %v406 = vld [vmem:[%s354 + $0x38] sm:$0xff]
        %v408 = vlaneseq
        %v409 = vshrl.u32 %v408, 7
        %v410 = vsub.s32 0, %v409
        %v411 = vrot.slane %v395, %v410
        %v413 = vmul.f32 %v399, %v411
        %v414 = vmul.f32 %v400, %v411
        %v415 = vmul.f32 %v401, %v411
        %v416 = vmul.f32 %v402, %v411
        %v417 = vmul.f32 %v403, %v411
        %v418 = vmul.f32 %v404, %v411
        %v419 = vmul.f32 %v405, %v411
        %v420 = vmul.f32 %v406, %v411
        %v422 = vlaneseq
        %v423 = vshrl.u32 %v422, 7
        %v424 = vsub.s32 0, %v423
        %v425 = vrot.slane %v398, %v424
        %v427 = vadd.f32 %v413, %v425
        %v428 = vadd.f32 %v414, %v425
        %v429 = vadd.f32 %v415, %v425
        %v430 = vadd.f32 %v416, %v425
        %v431 = vadd.f32 %v417, %v425
        %v432 = vadd.f32 %v418, %v425
        %v433 = vadd.f32 %v419, %v425
        %v434 = vadd.f32 %v420, %v425
        %v435 = vmax.f32 %v427, 0.0
        %v436 = vmax.f32 %v428, 0.0
        %v437 = vmax.f32 %v429, 0.0
        %v438 = vmax.f32 %v430, 0.0
        %v439 = vmax.f32 %v431, 0.0
        %v440 = vmax.f32 %v432, 0.0
        %v441 = vmax.f32 %v433, 0.0
        %v442 = vmax.f32 %v434, 0.0
        %s443 = scalar_lea.vmem %s354, 64 [#allocation2]
        %v444 = vld [vmem:[%s443] sm:$0xff]
        %v445 = vld [vmem:[%s443 + $0x8] sm:$0xff]
        %v446 = vld [vmem:[%s443 + $0x10] sm:$0xff]
        %v447 = vld [vmem:[%s443 + $0x18] sm:$0xff]
        %v448 = vld [vmem:[%s443 + $0x20] sm:$0xff]
        %v449 = vld [vmem:[%s443 + $0x28] sm:$0xff]
        %v450 = vld [vmem:[%s443 + $0x30] sm:$0xff]
        %v451 = vld [vmem:[%s443 + $0x38] sm:$0xff]
        %v452 = vmul.f32 %v444, %v411
        %v453 = vmul.f32 %v445, %v411
        %v454 = vmul.f32 %v446, %v411
        %v455 = vmul.f32 %v447, %v411
        %v456 = vmul.f32 %v448, %v411
        %v457 = vmul.f32 %v449, %v411
        %v458 = vmul.f32 %v450, %v411
        %v459 = vmul.f32 %v451, %v411
        %v460 = vadd.f32 %v452, %v425
        %v461 = vadd.f32 %v453, %v425
        %v462 = vadd.f32 %v454, %v425
        %v463 = vadd.f32 %v455, %v425
        %v464 = vadd.f32 %v456, %v425
        %v465 = vadd.f32 %v457, %v425
        %v466 = vadd.f32 %v458, %v425
        %v467 = vadd.f32 %v459, %v425
        %v468 = vmax.f32 %v460, 0.0
        %v469 = vmax.f32 %v461, 0.0
        %v470 = vmax.f32 %v462, 0.0
        %v471 = vmax.f32 %v463, 0.0
        %v472 = vmax.f32 %v464, 0.0
        %v473 = vmax.f32 %v465, 0.0
        %v474 = vmax.f32 %v466, 0.0
        %v475 = vmax.f32 %v467, 0.0
        %s476 = scalar_lea.vmem %s354, 128 [#allocation2]
        %v477 = vld [vmem:[%s476] sm:$0xff]
        %v478 = vld [vmem:[%s476 + $0x8] sm:$0xff]
        %v479 = vld [vmem:[%s476 + $0x10] sm:$0xff]
        %v480 = vld [vmem:[%s476 + $0x18] sm:$0xff]
        %v481 = vld [vmem:[%s476 + $0x20] sm:$0xff]
        %v482 = vld [vmem:[%s476 + $0x28] sm:$0xff]
        %v483 = vld [vmem:[%s476 + $0x30] sm:$0xff]
        %v484 = vld [vmem:[%s476 + $0x38] sm:$0xff]
        %v485 = vmul.f32 %v477, %v411
        %v486 = vmul.f32 %v478, %v411
        %v487 = vmul.f32 %v479, %v411
        %v488 = vmul.f32 %v480, %v411
        %v489 = vmul.f32 %v481, %v411
        %v490 = vmul.f32 %v482, %v411
        %v491 = vmul.f32 %v483, %v411
        %v492 = vmul.f32 %v484, %v411
        %v493 = vadd.f32 %v485, %v425
        %v494 = vadd.f32 %v486, %v425
        %v495 = vadd.f32 %v487, %v425
        %v496 = vadd.f32 %v488, %v425
        %v497 = vadd.f32 %v489, %v425
        %v498 = vadd.f32 %v490, %v425
        %v499 = vadd.f32 %v491, %v425
        %v500 = vadd.f32 %v492, %v425
        %v501 = vmax.f32 %v493, 0.0
        %v502 = vmax.f32 %v494, 0.0
        %v503 = vmax.f32 %v495, 0.0
        %v504 = vmax.f32 %v496, 0.0
        %v505 = vmax.f32 %v497, 0.0
        %v506 = vmax.f32 %v498, 0.0
        %v507 = vmax.f32 %v499, 0.0
        %v508 = vmax.f32 %v500, 0.0
        %s509 = scalar_lea.vmem %s354, 192 [#allocation2]
        %v510 = vld [vmem:[%s509] sm:$0xff]
        %v511 = vld [vmem:[%s509 + $0x8] sm:$0xff]
        %v512 = vld [vmem:[%s509 + $0x10] sm:$0xff]
        %v513 = vld [vmem:[%s509 + $0x18] sm:$0xff]
        %v514 = vld [vmem:[%s509 + $0x20] sm:$0xff]
        %v515 = vld [vmem:[%s509 + $0x28] sm:$0xff]
        %v516 = vld [vmem:[%s509 + $0x30] sm:$0xff]
        %v517 = vld [vmem:[%s509 + $0x38] sm:$0xff]
        %v518 = vmul.f32 %v510, %v411
        %v519 = vmul.f32 %v511, %v411
        %v520 = vmul.f32 %v512, %v411
        %v521 = vmul.f32 %v513, %v411
        %v522 = vmul.f32 %v514, %v411
        %v523 = vmul.f32 %v515, %v411
        %v524 = vmul.f32 %v516, %v411
        %v525 = vmul.f32 %v517, %v411
        %v526 = vadd.f32 %v518, %v425
        %v527 = vadd.f32 %v519, %v425
        %v528 = vadd.f32 %v520, %v425
        %v529 = vadd.f32 %v521, %v425
        %v530 = vadd.f32 %v522, %v425
        %v531 = vadd.f32 %v523, %v425
        %v532 = vadd.f32 %v524, %v425
        %v533 = vadd.f32 %v525, %v425
        %v534 = vmax.f32 %v526, 0.0
        %v535 = vmax.f32 %v527, 0.0
        %v536 = vmax.f32 %v528, 0.0
        %v537 = vmax.f32 %v529, 0.0
        %v538 = vmax.f32 %v530, 0.0
        %v539 = vmax.f32 %v531, 0.0
        %v540 = vmax.f32 %v532, 0.0
        %v541 = vmax.f32 %v533, 0.0
        %v542 = vmax.f32 %v435, %v468
        %v543 = vmax.f32 %v436, %v469
        %v544 = vmax.f32 %v437, %v470
        %v545 = vmax.f32 %v438, %v471
        %v546 = vmax.f32 %v439, %v472
        %v547 = vmax.f32 %v440, %v473
        %v548 = vmax.f32 %v441, %v474
        %v549 = vmax.f32 %v442, %v475
        %v550 = vmax.f32 %v501, %v534
        %v551 = vmax.f32 %v502, %v535
        %v552 = vmax.f32 %v503, %v536
        %v553 = vmax.f32 %v504, %v537
        %v554 = vmax.f32 %v505, %v538
        %v555 = vmax.f32 %v506, %v539
        %v556 = vmax.f32 %v507, %v540
        %v557 = vmax.f32 %v508, %v541
        %v558 = vmax.f32 %v542, %v550
        %v559 = vmax.f32 %v543, %v551
        %v560 = vmax.f32 %v544, %v552
        %v561 = vmax.f32 %v545, %v553
        %v562 = vmax.f32 %v546, %v554
        %v563 = vmax.f32 %v547, %v555
        %v564 = vmax.f32 %v548, %v556
        %v565 = vmax.f32 %v549, %v557
        %566 = vst [vmem:[%s384] sm:$0xff] %v558
        %567 = vst [vmem:[%s384 + $0x8] sm:$0xff] %v559
        %568 = vst [vmem:[%s384 + $0x10] sm:$0xff] %v560
        %569 = vst [vmem:[%s384 + $0x18] sm:$0xff] %v561
        %570 = vst [vmem:[%s384 + $0x20] sm:$0xff] %v562
        %571 = vst [vmem:[%s384 + $0x28] sm:$0xff] %v563
        %572 = vst [vmem:[%s384 + $0x30] sm:$0xff] %v564
        %573 = vst [vmem:[%s384 + $0x38] sm:$0xff] %v565
        %s574 = smul.u32 8, %s16
        %p575 = scmp.lt.s32.totalorder %s574, 15
        %s576 = scalar_select %p575, %s574, 15
        %s577 = smul.addr %s576, 8
        %s578 = scalar_lea.vmem %s5, %s577
        // Predicated region
        $region79: #{conv_block_forward.3} parent=73 // pred_check
          %p579 = pneg %p144
        $region80: #{conv_block_forward.3} parent=73 // pred_check_branch
          %581 = sbr.rel (%p579) target = $region82
        $region81: #{conv_block_forward.3} parent=73 // pred_region
          %s582 = smul.u32 8, %s16
        $region82: #{conv_block_forward.3} parent=73 // pred_fallthru
          _
      $region74: #{conv_block_forward.3} parent=5 // pred_fallthru
        _
      %p583 = scmp.le.s32.totalorder 2, %s11
      // Predicated region
      $region83: #{conv_block_forward.3} parent=5 // pred_check
        %p584 = pneg %p583
      $region84: #{conv_block_forward.3} parent=5 // pred_check_branch
        %586 = sbr.rel (%p584) target = $region86
      $region85: #{conv_block_forward.3} parent=5 // pred_region
        %s587 = ssub.s32 %s11, 2
        // Predicated region
        $region87: #{conv_block_forward.3} parent=85 // pred_check
          %p588 = pneg %p150
        $region88: #{conv_block_forward.3} parent=85 // pred_check_branch
          %590 = sbr.rel (%p588) target = $region90
        $region89: #{conv_block_forward.3} parent=85 // pred_region
          %s591 = smul.u32 8, %s17
          %p592 = scmp.lt.s32.totalorder %s591, 15
          %s593 = scalar_select %p592, %s591, 15
          %s594 = smul.addr %s593, 8
          %s595 = scalar_lea.vmem %s5, %s594
        $region90: #{conv_block_forward.3} parent=85 // pred_fallthru
          _
      $region86: #{conv_block_forward.3} parent=5 // pred_fallthru
        _
    $region6: #{conv_block_forward.3} parent=1 // loop_footer
      %s15 = sadd.s32 1, %s11
    $region7: #{conv_block_forward.3} parent=1 // loop_footer_branch
      %10 = sbr.rel target = $region3
    $region8: #{conv_block_forward.3} parent=1 // loop_exit
      _

// kernel: conv_block_forward.2
$region0: #{conv_block_forward.2}
  #allocation0 [shape = 'u32[]', space=smem, size = 0x4, offset = 0x4, fixed_abs, tag = 'smem constant byte address 0x4 - core index']
  #allocation1 [shape = 'u32[144,128]{1,0:T(1,128)}', space=vmem, size = 0x12000, scoped, tag = 'internal scratch']
  %s0 = inlined_call_operand.vmem [shape: bf16[512,36], index: 0, kind: input, shape index: {}]
  %s1 = inlined_call_operand.vmem [shape: bf16[36,128], index: 1, kind: input, shape index: {}]
  %s2 = inlined_call_operand.vmem [shape: f32[512,128], index: 2, kind: output, shape index: {0}]
  %s3 = inlined_call_operand.vmem [shape: f32[1,128], index: 3, kind: output, shape index: {1}]
  %s4 = inlined_call_operand.vmem [shape: f32[1,128], index: 4, kind: output, shape index: {2}]
  %5 = xla_tuple %s2, %s3, %s4
  %s6 = sld [smem:[#allocation0]]
  $region61: #{conv_block_forward.2} parent=0
    _
  %s8 = ssub.s32 1, %s6
  %s9 = scalar_select 0, %s8, %s6
  loop: start=0, step=1, limit=4
  $region2: #{conv_block_forward.2} parent=0 // loop_pre_header
    _
  $region3: #{conv_block_forward.2} parent=0 // loop_header
    %s11 = sphi 0, %s15
    %p12 = scmp.ge.s32.totalorder %s11, 4
    %s21 = sphi 0, %s23
    %s24 = sphi 0, %s21
    %s25 = sphi 0, %s24
    %s41 = sphi 0, %s25
    %s45 = sphi 0, %s45
    %s47 = sphi 0, %s45
    %s48 = sphi 0, %s47
    %s62 = sphi 0, %s48
    %s68 = sphi 0, %s70
    %s71 = sphi 0, %s68
    %s72 = sphi 0, %s71
    %s88 = sphi 0, %s72
    %s92 = sphi 0, %s92
    %s94 = sphi 0, %s92
    %s95 = sphi 0, %s94
    %s109 = sphi 0, %s95
    %s113 = sphi 0, %s113
    %s115 = sphi 0, %s113
    %s116 = sphi 0, %s115
    %s130 = sphi 0, %s116
  $region4: #{conv_block_forward.2} parent=0 // loop_header_branch
    %14 = sbr.rel (%p12) target = $region8
  $region5: #{conv_block_forward.2} parent=0 // loop_body
    %s16 = ssub.s32 %s11, 1
    %s17 = ssub.s32 %s11, 2
    %s18 = sadd.s32 %s11, 1
    %s19 = ssub.s32 %s11, %s18
    %p20 = scmp.eq.s32.totalorder %s19, 0
    %s22 = sadd.s32 %s21, 1
    %s23 = scalar_select %p20, %s21, %s22
    %p26 = pneg %p20
    %p27 = scmp.eq.s32.totalorder %s11, 1
    %p28 = por %p26, %p27
    %p29 = scmp.ne.s32.totalorder %s21, %s24
    %p30 = scmp.eq.s32.totalorder %s11, 0
    %p31 = por %p29, %p30
    %p32 = scmp.ne.s32.totalorder %s21, %s24
    %p33 = scmp.eq.s32.totalorder %s16, 1
    %p34 = por %p32, %p33
    %p35 = scmp.ne.s32.totalorder %s24, %s25
    %p36 = scmp.eq.s32.totalorder %s16, 0
    %p37 = por %p35, %p36
    %p38 = scmp.ne.s32.totalorder %s24, %s25
    %p39 = scmp.eq.s32.totalorder %s17, 1
    %p40 = por %p38, %p39
    %p42 = scmp.ne.s32.totalorder %s25, %s41
    %p43 = scmp.eq.s32.totalorder %s17, 0
    %p44 = por %p42, %p43
    %s46 = sadd.s32 %s45, 1
    %p49 = scmp.eq.s32.totalorder %s11, 1
    %p50 = scmp.ne.s32.totalorder %s45, %s47
    %p51 = scmp.eq.s32.totalorder %s11, 0
    %p52 = por %p50, %p51
    %p53 = scmp.ne.s32.totalorder %s45, %s47
    %p54 = scmp.eq.s32.totalorder %s16, 1
    %p55 = por %p53, %p54
    %p56 = scmp.ne.s32.totalorder %s47, %s48
    %p57 = scmp.eq.s32.totalorder %s16, 0
    %p58 = por %p56, %p57
    %p59 = scmp.ne.s32.totalorder %s47, %s48
    %p60 = scmp.eq.s32.totalorder %s17, 1
    %p61 = por %p59, %p60
    %p63 = scmp.ne.s32.totalorder %s48, %s62
    %p64 = scmp.eq.s32.totalorder %s17, 0
    %p65 = por %p63, %p64
    %s66 = ssub.s32 %s11, %s18
    %p67 = scmp.eq.s32.totalorder %s66, 0
    %s69 = sadd.s32 %s68, 1
    %s70 = scalar_select %p67, %s68, %s69
    %p73 = pneg %p67
    %p74 = scmp.eq.s32.totalorder %s11, 1
    %p75 = por %p73, %p74
    %p76 = scmp.ne.s32.totalorder %s68, %s71
    %p77 = scmp.eq.s32.totalorder %s11, 0
    %p78 = por %p76, %p77
    %p79 = scmp.ne.s32.totalorder %s68, %s71
    %p80 = scmp.eq.s32.totalorder %s16, 1
    %p81 = por %p79, %p80
    %p82 = scmp.ne.s32.totalorder %s71, %s72
    %p83 = scmp.eq.s32.totalorder %s16, 0
    %p84 = por %p82, %p83
    %p85 = scmp.ne.s32.totalorder %s71, %s72
    %p86 = scmp.eq.s32.totalorder %s17, 1
    %p87 = por %p85, %p86
    %p89 = scmp.ne.s32.totalorder %s72, %s88
    %p90 = scmp.eq.s32.totalorder %s17, 0
    %p91 = por %p89, %p90
    %s93 = sadd.s32 %s92, 1
    %p96 = scmp.eq.s32.totalorder %s11, 1
    %p97 = scmp.ne.s32.totalorder %s92, %s94
    %p98 = scmp.eq.s32.totalorder %s11, 0
    %p99 = por %p97, %p98
    %p100 = scmp.ne.s32.totalorder %s92, %s94
    %p101 = scmp.eq.s32.totalorder %s16, 1
    %p102 = por %p100, %p101
    %p103 = scmp.ne.s32.totalorder %s94, %s95
    %p104 = scmp.eq.s32.totalorder %s16, 0
    %p105 = por %p103, %p104
    %p106 = scmp.ne.s32.totalorder %s94, %s95
    %p107 = scmp.eq.s32.totalorder %s17, 1
    %p108 = por %p106, %p107
    %p110 = scmp.ne.s32.totalorder %s95, %s109
    %p111 = scmp.eq.s32.totalorder %s17, 0
    %p112 = por %p110, %p111
    %s114 = sadd.s32 %s113, 1
    %p117 = scmp.eq.s32.totalorder %s11, 1
    %p118 = scmp.ne.s32.totalorder %s113, %s115
    %p119 = scmp.eq.s32.totalorder %s11, 0
    %p120 = por %p118, %p119
    %p121 = scmp.ne.s32.totalorder %s113, %s115
    %p122 = scmp.eq.s32.totalorder %s16, 1
    %p123 = por %p121, %p122
    %p124 = scmp.ne.s32.totalorder %s115, %s116
    %p125 = scmp.eq.s32.totalorder %s16, 0
    %p126 = por %p124, %p125
    %p127 = scmp.ne.s32.totalorder %s115, %s116
    %p128 = scmp.eq.s32.totalorder %s17, 1
    %p129 = por %p127, %p128
    %p131 = scmp.ne.s32.totalorder %s116, %s130
    %p132 = scmp.eq.s32.totalorder %s17, 0
    %p133 = por %p131, %p132
    %p134 = scmp.le.s32.totalorder 1, %s11
    %p135 = scmp.lt.s32.totalorder %s11, 3
    %p136 = pnand %p134, %p135
    %p137 = pneg %p136
    // Predicated region
    $region9: #{conv_block_forward.2} parent=5 // pred_check
      _
    $region10: #{conv_block_forward.2} parent=5 // pred_check_branch
      %139 = sbr.rel (%p136) target = $region12
    $region11: #{conv_block_forward.2} parent=5 // pred_region
      %s140 = ssub.s32 %s11, 1
      // Predicated region
      $region13: #{conv_block_forward.2} parent=11 // pred_check
        %p141 = pneg %p58
      $region14: #{conv_block_forward.2} parent=11 // pred_check_branch
        %143 = sbr.rel (%p141) target = $region16
      $region15: #{conv_block_forward.2} parent=11 // pred_region
        _
      $region16: #{conv_block_forward.2} parent=11 // pred_fallthru
        _
    $region12: #{conv_block_forward.2} parent=5 // pred_fallthru
      _
    %p144 = scmp.lt.s32.totalorder %s11, 2
    // Predicated region
    $region17: #{conv_block_forward.2} parent=5 // pred_check
      %p145 = pneg %p144
    $region18: #{conv_block_forward.2} parent=5 // pred_check_branch
      %147 = sbr.rel (%p145) target = $region20
    $region19: #{conv_block_forward.2} parent=5 // pred_region
      // Predicated region
      $region21: #{conv_block_forward.2} parent=19 // pred_check
        %p148 = pneg %p31
      $region22: #{conv_block_forward.2} parent=19 // pred_check_branch
        %150 = sbr.rel (%p148) target = $region24
      $region23: #{conv_block_forward.2} parent=19 // pred_region
        %s151 = smul.u32 32, %s11
        %p152 = scmp.lt.s32.totalorder %s151, 63
        %s153 = scalar_select %p152, %s151, 63
        %s154 = smul.addr %s153, 4
        %s155 = scalar_lea.vmem %s0, %s154
        %s156 = smul.u32 32, %s11
      $region24: #{conv_block_forward.2} parent=19 // pred_fallthru
        _
    $region20: #{conv_block_forward.2} parent=5 // pred_fallthru
      _
    %p157 = scmp.le.s32.totalorder 1, %s11
    %p158 = scmp.lt.s32.totalorder %s11, 3
    %p159 = pnand %p157, %p158
    %p160 = pneg %p159
    // Predicated region
    $region25: #{conv_block_forward.2} parent=5 // pred_check
      _
    $region26: #{conv_block_forward.2} parent=5 // pred_check_branch
      %162 = sbr.rel (%p159) target = $region28
    $region27: #{conv_block_forward.2} parent=5 // pred_region
      %s163 = ssub.s32 %s11, 1
      %s164 = smul.u32 32, %s16
      %p165 = scmp.lt.s32.totalorder %s164, 63
      %s166 = scalar_select %p165, %s164, 63
      %s167 = smul.addr %s166, 4
      %s168 = scalar_lea.vmem %s0, %s167
      %p169 = pneg %p37
      %p170 = pneg %p34
      %p171 = pneg %p58
      %p172 = pneg %p55
      %p173 = pneg %p84
      %p174 = pneg %p81
      %s175 = smul.u32 32, %s16
      %p176 = scmp.lt.s32.totalorder %s175, 63
      %s177 = scalar_select %p176, %s175, 63
      %s178 = smul.addr %s177, 8
      %s179 = scalar_lea.vmem %s2, %s178
      %p180 = pneg %p105
      %p181 = pneg %p102
      %p182 = pneg %p126
      %p183 = pneg %p123
      %s184 = smul.u32 32, %s16
      %p185 = scmp.lt.s32.totalorder %s184, 63
      %s186 = scalar_select %p185, %s184, 63
      %s187 = smul.addr %s186, 4
      %s188 = scalar_lea.vmem %s0, %s187
      %s189 = smul.u32 32, %s16
      %s190 = smul.u32 32, %s16
      %p191 = scmp.lt.s32.totalorder %s190, 63
      %s192 = scalar_select %p191, %s190, 63
      %s193 = smul.addr %s192, 8
      %s194 = scalar_lea.vmem %s2, %s193
      %s195 = smul.u32 32, %s16
      %v197 = vld [vmem:[%s188] sm:$0xf]
      %v198 = vld [vmem:[%s188 + $0x4] sm:$0xf]
      %v199 = vld [vmem:[%s188 + $0x8] sm:$0xf]
      %v200 = vld [vmem:[%s188 + $0xc] sm:$0xf]
      %v201 = vld [vmem:[%s188 + $0x10] sm:$0xf]
      %v202 = vld [vmem:[%s188 + $0x14] sm:$0xf]
      %v203 = vld [vmem:[%s188 + $0x18] sm:$0xf]
      %v204 = vld [vmem:[%s188 + $0x1c] sm:$0xf]
      %v205 = vld [vmem:[%s188 + $0x20] sm:$0xf]
      %v206 = vld [vmem:[%s188 + $0x24] sm:$0xf]
      %v207 = vld [vmem:[%s188 + $0x28] sm:$0xf]
      %v208 = vld [vmem:[%s188 + $0x2c] sm:$0xf]
      %v209 = vld [vmem:[%s188 + $0x30] sm:$0xf]
      %v210 = vld [vmem:[%s188 + $0x34] sm:$0xf]
      %v211 = vld [vmem:[%s188 + $0x38] sm:$0xf]
      %v212 = vld [vmem:[%s188 + $0x3c] sm:$0xf]
      %v213 = vld [vmem:[%s188 + $0x40] sm:$0xf]
      %v214 = vld [vmem:[%s188 + $0x44] sm:$0xf]
      %v215 = vld [vmem:[%s188 + $0x48] sm:$0xf]
      %v216 = vld [vmem:[%s188 + $0x4c] sm:$0xf]
      %v217 = vld [vmem:[%s188 + $0x50] sm:$0xf]
      %v218 = vld [vmem:[%s188 + $0x54] sm:$0xf]
      %v219 = vld [vmem:[%s188 + $0x58] sm:$0xf]
      %v220 = vld [vmem:[%s188 + $0x5c] sm:$0xf]
      %v221 = vld [vmem:[%s188 + $0x60] sm:$0xf]
      %v222 = vld [vmem:[%s188 + $0x64] sm:$0xf]
      %v223 = vld [vmem:[%s188 + $0x68] sm:$0xf]
      %v224 = vld [vmem:[%s188 + $0x6c] sm:$0xf]
      %v225 = vld [vmem:[%s188 + $0x70] sm:$0xf]
      %v226 = vld [vmem:[%s188 + $0x74] sm:$0xf]
      %v227 = vld [vmem:[%s188 + $0x78] sm:$0xf]
      %v228 = vld [vmem:[%s188 + $0x7c] sm:$0xf]
      %v229 = vld [vmem:[%s1] sm:$0xf]
      %v230 = vld [vmem:[%s1 + $0x4] sm:$0xf]
      %v231 = vld [vmem:[%s1 + $0x8] sm:$0xf]
      %v232 = vld [vmem:[%s1 + $0xc] sm:$0xf]
      %v233 = vld [vmem:[%s1 + $0x10] sm:$0x3]
      %v266 = vunpack.c.l.b16 %v197
      %v267 = vunpack.c.l.b16 %v198
      %v268 = vunpack.c.l.b16 %v199
      %v269 = vunpack.c.l.b16 %v200
      %v270 = vunpack.c.l.b16 %v201
      %v271 = vunpack.c.l.b16 %v202
      %v272 = vunpack.c.l.b16 %v203
      %v273 = vunpack.c.l.b16 %v204
      %v274 = vunpack.c.l.b16 %v205
      %v275 = vunpack.c.l.b16 %v206
      %v276 = vunpack.c.l.b16 %v207
      %v277 = vunpack.c.l.b16 %v208
      %v278 = vunpack.c.l.b16 %v209
      %v279 = vunpack.c.l.b16 %v210
      %v280 = vunpack.c.l.b16 %v211
      %v281 = vunpack.c.l.b16 %v212
      %v282 = vunpack.c.l.b16 %v213
      %v283 = vunpack.c.l.b16 %v214
      %v284 = vunpack.c.l.b16 %v215
      %v285 = vunpack.c.l.b16 %v216
      %v286 = vunpack.c.l.b16 %v217
      %v287 = vunpack.c.l.b16 %v218
      %v288 = vunpack.c.l.b16 %v219
      %v289 = vunpack.c.l.b16 %v220
      %v290 = vunpack.c.l.b16 %v221
      %v291 = vunpack.c.l.b16 %v222
      %v292 = vunpack.c.l.b16 %v223
      %v293 = vunpack.c.l.b16 %v224
      %v294 = vunpack.c.l.b16 %v225
      %v295 = vunpack.c.l.b16 %v226
      %v296 = vunpack.c.l.b16 %v227
      %v297 = vunpack.c.l.b16 %v228
      %v298 = vpack.c.b16 %v267, %v266
      %v299 = vpack.c.b16 %v269, %v268
      %v300 = vpack.c.b16 %v271, %v270
      %v301 = vpack.c.b16 %v273, %v272
      %v302 = vpack.c.b16 %v275, %v274
      %v303 = vpack.c.b16 %v277, %v276
      %v304 = vpack.c.b16 %v279, %v278
      %v305 = vpack.c.b16 %v281, %v280
      %v306 = vpack.c.b16 %v283, %v282
      %v307 = vpack.c.b16 %v285, %v284
      %v308 = vpack.c.b16 %v287, %v286
      %v309 = vpack.c.b16 %v289, %v288
      %v310 = vpack.c.b16 %v291, %v290
      %v311 = vpack.c.b16 %v293, %v292
      %v312 = vpack.c.b16 %v295, %v294
      %v313 = vpack.c.b16 %v297, %v296
      %v319 = vunpack.c.l.b16 %v229
      %v320 = vunpack.c.l.b16 %v230
      %v321 = vunpack.c.l.b16 %v231
      %v322 = vunpack.c.l.b16 %v232
      %v323 = vunpack.c.l.b16 %v233
      %v324 = vpack.c.b16 %v320, %v319
      %v325 = vpack.c.b16 %v322, %v321
      %v326 = vpack.c.b16 %v323, %v323
      %vm329 = vcmask 293888
      %v331 = vsel %vm329, %v298, 0
      %v334 = vsel %vm329, %v299, 0
      %v337 = vsel %vm329, %v300, 0
      %v340 = vsel %vm329, %v301, 0
      %v343 = vsel %vm329, %v302, 0
      %v346 = vsel %vm329, %v303, 0
      %v349 = vsel %vm329, %v304, 0
      %v352 = vsel %vm329, %v305, 0
      %v355 = vsel %vm329, %v306, 0
      %v358 = vsel %vm329, %v307, 0
      %v361 = vsel %vm329, %v308, 0
      %v364 = vsel %vm329, %v309, 0
      %v367 = vsel %vm329, %v310, 0
      %v370 = vsel %vm329, %v311, 0
      %v373 = vsel %vm329, %v312, 0
      %v376 = vsel %vm329, %v313, 0
      %vm378 = vcmask 1041408
      %v380 = vsel %vm378, %v326, 0
      %382 = vmatprep.subr.bf16.mxu0 0
      %383 = vmatpush1.bf16.msra.mxu0 %v324
      %384 = vmatprep.subr.bf16.mxu0 0
      %385 = vmatpush1.bf16.msra.mxu0 %v325
      %386 = vmatprep.subr.bf16.mxu0 0
      %387 = vmatpush1.bf16.msra.mxu0 %v380
      %388 = vmatprep.subr.bf16.mxu0 0
      %389 = vmatpush1.bf16.msra.mxu0 0
      %390 = vmatprep.subr.bf16.mxu0 0
      %391 = vmatpush1.bf16.msra.mxu0 0
      %392 = vmatprep.subr.bf16.mxu0 0
      %393 = vmatpush1.bf16.msra.mxu0 0
      %394 = vmatprep.subr.bf16.mxu0 0
      %395 = vmatpush1.bf16.msra.mxu0 0
      %396 = vmatprep.subr.bf16.mxu0 0
      %397 = vmatpush1.bf16.msra.mxu0 0
      %398 = vmatprep.subr.bf16.mxu0 0
      %399 = vmatpush1.bf16.msra.mxu0 0
      %400 = vmatprep.subr.bf16.mxu0 0
      %401 = vmatpush1.bf16.msra.mxu0 0
      %402 = vmatprep.subr.bf16.mxu0 0
      %403 = vmatpush1.bf16.msra.mxu0 0
      %404 = vmatprep.subr.bf16.mxu0 0
      %405 = vmatpush1.bf16.msra.mxu0 0
      %406 = vmatprep.subr.bf16.mxu0 0
      %407 = vmatpush1.bf16.msra.mxu0 0
      %408 = vmatprep.subr.bf16.mxu0 0
      %409 = vmatpush1.bf16.msra.mxu0 0
      %410 = vmatprep.subr.bf16.mxu0 0
      %411 = vmatpush1.bf16.msra.mxu0 0
      %412 = vmatprep.subr.bf16.mxu0 0
      %413 = vmatpush1.bf16.msra.mxu0 0
      %414 = vmatprep.mubr.bf16.mxu0 0
      %415 = vmatmul.mubr.bf16.gmra.mrb[0].mxu0 %v331
      %v416 = vpop.f32.mrb[0].mxu0
      %v417 = vadd.f32 0.0, %v416
      %v418 = vpop.f32.mrb[0].mxu0
      %v419 = vpop.f32.mrb[0].mxu0
      %v420 = vadd.f32 0.0, %v419
      %v421 = vpop.f32.mrb[0].mxu0
      %422 = vmatprep.mubr.bf16.mxu0 0
      %423 = vmatmul.mubr.bf16.gmra.mrb[0].mxu0 %v334
      %v424 = vpop.f32.mrb[0].mxu0
      %v425 = vadd.f32 0.0, %v424
      %v426 = vpop.f32.mrb[0].mxu0
      %v427 = vpop.f32.mrb[0].mxu0
      %v428 = vadd.f32 0.0, %v427
      %v429 = vpop.f32.mrb[0].mxu0
      %430 = vmatprep.mubr.bf16.mxu0 0
      %431 = vmatmul.mubr.bf16.gmra.mrb[0].mxu0 %v337
      %v432 = vpop.f32.mrb[0].mxu0
      %v433 = vadd.f32 0.0, %v432
      %v434 = vpop.f32.mrb[0].mxu0
      %v435 = vpop.f32.mrb[0].mxu0
      %v436 = vadd.f32 0.0, %v435
      %v437 = vpop.f32.mrb[0].mxu0
      %438 = vmatprep.mubr.bf16.mxu0 0
      %439 = vmatmul.mubr.bf16.gmra.mrb[0].mxu0 %v340
      %v440 = vpop.f32.mrb[0].mxu0
      %v441 = vadd.f32 0.0, %v440
      %v442 = vpop.f32.mrb[0].mxu0
      %v443 = vpop.f32.mrb[0].mxu0
      %v444 = vadd.f32 0.0, %v443
      %v445 = vpop.f32.mrb[0].mxu0
      %446 = vmatprep.mubr.bf16.mxu0 0
      %447 = vmatmul.mubr.bf16.gmra.mrb[0].mxu0 %v343
      %v448 = vpop.f32.mrb[0].mxu0
      %v449 = vadd.f32 0.0, %v448
      %v450 = vpop.f32.mrb[0].mxu0
      %v451 = vpop.f32.mrb[0].mxu0
      %v452 = vadd.f32 0.0, %v451
      %v453 = vpop.f32.mrb[0].mxu0
      %454 = vmatprep.mubr.bf16.mxu0 0
      %455 = vmatmul.mubr.bf16.gmra.mrb[0].mxu0 %v346
      %v456 = vpop.f32.mrb[0].mxu0
      %v457 = vadd.f32 0.0, %v456
      %v458 = vpop.f32.mrb[0].mxu0
      %v459 = vpop.f32.mrb[0].mxu0
      %v460 = vadd.f32 0.0, %v459
      %v461 = vpop.f32.mrb[0].mxu0
      %462 = vmatprep.mubr.bf16.mxu0 0
      %463 = vmatmul.mubr.bf16.gmra.mrb[0].mxu0 %v349
      %v464 = vpop.f32.mrb[0].mxu0
      %v465 = vadd.f32 0.0, %v464
      %v466 = vpop.f32.mrb[0].mxu0
      %v467 = vpop.f32.mrb[0].mxu0
      %v468 = vadd.f32 0.0, %v467
      %v469 = vpop.f32.mrb[0].mxu0
      %470 = vmatprep.mubr.bf16.mxu0 0
      %471 = vmatmul.mubr.bf16.gmra.mrb[0].mxu0 %v352
      %v472 = vpop.f32.mrb[0].mxu0
      %v473 = vadd.f32 0.0, %v472
      %v474 = vpop.f32.mrb[0].mxu0
      %v475 = vpop.f32.mrb[0].mxu0
      %v476 = vadd.f32 0.0, %v475
      %v477 = vpop.f32.mrb[0].mxu0
      %478 = vmatprep.mubr.bf16.mxu0 0
      %479 = vmatmul.mubr.bf16.gmra.mrb[0].mxu0 %v355
      %v480 = vpop.f32.mrb[0].mxu0
      %v481 = vadd.f32 0.0, %v480
      %v482 = vpop.f32.mrb[0].mxu0
      %v483 = vpop.f32.mrb[0].mxu0
      %v484 = vadd.f32 0.0, %v483
      %v485 = vpop.f32.mrb[0].mxu0
      %486 = vmatprep.mubr.bf16.mxu0 0
      %487 = vmatmul.mubr.bf16.gmra.mrb[0].mxu0 %v358
      %v488 = vpop.f32.mrb[0].mxu0
      %v489 = vadd.f32 0.0, %v488
      %v490 = vpop.f32.mrb[0].mxu0
      %v491 = vpop.f32.mrb[0].mxu0
      %v492 = vadd.f32 0.0, %v491
      %v493 = vpop.f32.mrb[0].mxu0
      %494 = vmatprep.mubr.bf16.mxu0 0
      %495 = vmatmul.mubr.bf16.gmra.mrb[0].mxu0 %v361
      %v496 = vpop.f32.mrb[0].mxu0
      %v497 = vadd.f32 0.0, %v496
      %v498 = vpop.f32.mrb[0].mxu0
      %v499 = vpop.f32.mrb[0].mxu0
      %v500 = vadd.f32 0.0, %v499
      %v501 = vpop.f32.mrb[0].mxu0
      %502 = vmatprep.mubr.bf16.mxu0 0
      %503 = vmatmul.mubr.bf16.gmra.mrb[0].mxu0 %v364
      %v504 = vpop.f32.mrb[0].mxu0
      %v505 = vadd.f32 0.0, %v504
      %v506 = vpop.f32.mrb[0].mxu0
      %v507 = vpop.f32.mrb[0].mxu0
      %v508 = vadd.f32 0.0, %v507
      %v509 = vpop.f32.mrb[0].mxu0
      %510 = vmatprep.mubr.bf16.mxu0 0
      %511 = vmatmul.mubr.bf16.gmra.mrb[0].mxu0 %v367
      %v512 = vpop.f32.mrb[0].mxu0
      %v513 = vadd.f32 0.0, %v512
      %v514 = vpop.f32.mrb[0].mxu0
      %v515 = vpop.f32.mrb[0].mxu0
      %v516 = vadd.f32 0.0, %v515
      %v517 = vpop.f32.mrb[0].mxu0
      %518 = vmatprep.mubr.bf16.mxu0 0
      %519 = vmatmul.mubr.bf16.gmra.mrb[0].mxu0 %v370
      %v520 = vpop.f32.mrb[0].mxu0
      %v521 = vadd.f32 0.0, %v520
      %v522 = vpop.f32.mrb[0].mxu0
      %v523 = vpop.f32.mrb[0].mxu0
      %v524 = vadd.f32 0.0, %v523
      %v525 = vpop.f32.mrb[0].mxu0
      %526 = vmatprep.mubr.bf16.mxu0 0
      %527 = vmatmul.mubr.bf16.gmra.mrb[0].mxu0 %v373
      %v528 = vpop.f32.mrb[0].mxu0
      %v529 = vadd.f32 0.0, %v528
      %v530 = vpop.f32.mrb[0].mxu0
      %v531 = vpop.f32.mrb[0].mxu0
      %v532 = vadd.f32 0.0, %v531
      %v533 = vpop.f32.mrb[0].mxu0
      %534 = vmatprep.mubr.bf16.mxu0 0
      %535 = vmatmul.mubr.bf16.gmra.mrb[0].mxu0 %v376
      %v536 = vpop.f32.mrb[0].mxu0
      %v537 = vadd.f32 0.0, %v536
      %v538 = vpop.f32.mrb[0].mxu0
      %v539 = vpop.f32.mrb[0].mxu0
      %v540 = vadd.f32 0.0, %v539
      %v541 = vpop.f32.mrb[0].mxu0
      %542 = vdwg.mxu0
      %543 = vst [vmem:[%s194] sm:$0xff] %v417
      %544 = vst [vmem:[%s194 + $0x8] sm:$0xff] %v420
      %545 = vst [vmem:[%s194 + $0x10] sm:$0xff] %v425
      %546 = vst [vmem:[%s194 + $0x18] sm:$0xff] %v428
      %547 = vst [vmem:[%s194 + $0x20] sm:$0xff] %v433
      %548 = vst [vmem:[%s194 + $0x28] sm:$0xff] %v436
      %549 = vst [vmem:[%s194 + $0x30] sm:$0xff] %v441
      %550 = vst [vmem:[%s194 + $0x38] sm:$0xff] %v444
      %551 = vst [vmem:[%s194 + $0x40] sm:$0xff] %v449
      %552 = vst [vmem:[%s194 + $0x48] sm:$0xff] %v452
      %553 = vst [vmem:[%s194 + $0x50] sm:$0xff] %v457
      %554 = vst [vmem:[%s194 + $0x58] sm:$0xff] %v460
      %555 = vst [vmem:[%s194 + $0x60] sm:$0xff] %v465
      %556 = vst [vmem:[%s194 + $0x68] sm:$0xff] %v468
      %557 = vst [vmem:[%s194 + $0x70] sm:$0xff] %v473
      %558 = vst [vmem:[%s194 + $0x78] sm:$0xff] %v476
      %559 = vst [vmem:[%s194 + $0x80] sm:$0xff] %v481
      %560 = vst [vmem:[%s194 + $0x88] sm:$0xff] %v484
      %561 = vst [vmem:[%s194 + $0x90] sm:$0xff] %v489
      %562 = vst [vmem:[%s194 + $0x98] sm:$0xff] %v492
      %563 = vst [vmem:[%s194 + $0xa0] sm:$0xff] %v497
      %564 = vst [vmem:[%s194 + $0xa8] sm:$0xff] %v500
      %565 = vst [vmem:[%s194 + $0xb0] sm:$0xff] %v505
      %566 = vst [vmem:[%s194 + $0xb8] sm:$0xff] %v508
      %567 = vst [vmem:[%s194 + $0xc0] sm:$0xff] %v513
      %568 = vst [vmem:[%s194 + $0xc8] sm:$0xff] %v516
      %569 = vst [vmem:[%s194 + $0xd0] sm:$0xff] %v521
      %570 = vst [vmem:[%s194 + $0xd8] sm:$0xff] %v524
      %571 = vst [vmem:[%s194 + $0xe0] sm:$0xff] %v529
      %572 = vst [vmem:[%s194 + $0xe8] sm:$0xff] %v532
      %573 = vst [vmem:[%s194 + $0xf0] sm:$0xff] %v537
      %574 = vst [vmem:[%s194 + $0xf8] sm:$0xff] %v540
      %p575 = scmp.eq.s32.totalorder %s16, 0
      // Predicated region
      $region29: #{conv_block_forward.2} parent=27 // pred_check
        %p576 = pneg %p575
      $region30: #{conv_block_forward.2} parent=27 // pred_check_branch
        %578 = sbr.rel (%p576) target = $region32
      $region31: #{conv_block_forward.2} parent=27 // pred_region
        %579 = vst [vmem:[%s3] sm:$0x1] 0.0
        %580 = vst [vmem:[%s4] sm:$0x1] 0.0
      $region32: #{conv_block_forward.2} parent=27 // pred_fallthru
        _
      %v581 = vld [vmem:[%s3] sm:$0x1]
      %v582 = vadd.f32 %v417, %v420
      %v583 = vadd.f32 %v582, %v425
      %v584 = vadd.f32 %v583, %v428
      %v585 = vadd.f32 %v584, %v433
      %v586 = vadd.f32 %v585, %v436
      %v587 = vadd.f32 %v586, %v441
      %v588 = vadd.f32 %v587, %v444
      %v589 = vadd.f32 %v588, %v449
      %v590 = vadd.f32 %v589, %v452
      %v591 = vadd.f32 %v590, %v457
      %v592 = vadd.f32 %v591, %v460
      %v593 = vadd.f32 %v592, %v465
      %v594 = vadd.f32 %v593, %v468
      %v595 = vadd.f32 %v594, %v473
      %v596 = vadd.f32 %v595, %v476
      %v597 = vadd.f32 %v596, %v481
      %v598 = vadd.f32 %v597, %v484
      %v599 = vadd.f32 %v598, %v489
      %v600 = vadd.f32 %v599, %v492
      %v601 = vadd.f32 %v600, %v497
      %v602 = vadd.f32 %v601, %v500
      %v603 = vadd.f32 %v602, %v505
      %v604 = vadd.f32 %v603, %v508
      %v605 = vadd.f32 %v604, %v513
      %v606 = vadd.f32 %v605, %v516
      %v607 = vadd.f32 %v606, %v521
      %v608 = vadd.f32 %v607, %v524
      %v609 = vadd.f32 %v608, %v529
      %v610 = vadd.f32 %v609, %v532
      %v611 = vadd.f32 %v610, %v537
      %v612 = vadd.f32 %v611, %v540
      %v613 = vrot.slane %v612, 4
      %v614 = vadd.f32 %v612, %v613
      %v615 = vrot.slane %v614, 2
      %v616 = vadd.f32 %v614, %v615
      %v617 = vrot.slane %v616, 1
      %v618 = vadd.f32 %v616, %v617
      %v619 = vadd.f32 %v581, %v618
      %620 = vst [vmem:[%s3] sm:$0x1] %v619
      %v621 = vld [vmem:[%s4] sm:$0x1]
      %v622 = vmul.f32 %v417, %v417
      %v623 = vmul.f32 %v420, %v420
      %v624 = vmul.f32 %v425, %v425
      %v625 = vmul.f32 %v428, %v428
      %v626 = vmul.f32 %v433, %v433
      %v627 = vmul.f32 %v436, %v436
      %v628 = vmul.f32 %v441, %v441
      %v629 = vmul.f32 %v444, %v444
      %v630 = vmul.f32 %v449, %v449
      %v631 = vmul.f32 %v452, %v452
      %v632 = vmul.f32 %v457, %v457
      %v633 = vmul.f32 %v460, %v460
      %v634 = vmul.f32 %v465, %v465
      %v635 = vmul.f32 %v468, %v468
      %v636 = vmul.f32 %v473, %v473
      %v637 = vmul.f32 %v476, %v476
      %v638 = vmul.f32 %v481, %v481
      %v639 = vmul.f32 %v484, %v484
      %v640 = vmul.f32 %v489, %v489
      %v641 = vmul.f32 %v492, %v492
      %v642 = vmul.f32 %v497, %v497
      %v643 = vmul.f32 %v500, %v500
      %v644 = vmul.f32 %v505, %v505
      %v645 = vmul.f32 %v508, %v508
      %v646 = vmul.f32 %v513, %v513
      %v647 = vmul.f32 %v516, %v516
      %v648 = vmul.f32 %v521, %v521
      %v649 = vmul.f32 %v524, %v524
      %v650 = vmul.f32 %v529, %v529
      %v651 = vmul.f32 %v532, %v532
      %v652 = vmul.f32 %v537, %v537
      %v653 = vmul.f32 %v540, %v540
      %v654 = vadd.f32 %v622, %v623
      %v655 = vadd.f32 %v654, %v624
      %v656 = vadd.f32 %v655, %v625
      %v657 = vadd.f32 %v656, %v626
      %v658 = vadd.f32 %v657, %v627
      %v659 = vadd.f32 %v658, %v628
      %v660 = vadd.f32 %v659, %v629
      %v661 = vadd.f32 %v660, %v630
      %v662 = vadd.f32 %v661, %v631
      %v663 = vadd.f32 %v662, %v632
      %v664 = vadd.f32 %v663, %v633
      %v665 = vadd.f32 %v664, %v634
      %v666 = vadd.f32 %v665, %v635
      %v667 = vadd.f32 %v666, %v636
      %v668 = vadd.f32 %v667, %v637
      %v669 = vadd.f32 %v668, %v638
      %v670 = vadd.f32 %v669, %v639
      %v671 = vadd.f32 %v670, %v640
      %v672 = vadd.f32 %v671, %v641
      %v673 = vadd.f32 %v672, %v642
      %v674 = vadd.f32 %v673, %v643
      %v675 = vadd.f32 %v674, %v644
      %v676 = vadd.f32 %v675, %v645
      %v677 = vadd.f32 %v676, %v646
      %v678 = vadd.f32 %v677, %v647
      %v679 = vadd.f32 %v678, %v648
      %v680 = vadd.f32 %v679, %v649
      %v681 = vadd.f32 %v680, %v650
      %v682 = vadd.f32 %v681, %v651
      %v683 = vadd.f32 %v682, %v652
      %v684 = vadd.f32 %v683, %v653
      %v685 = vrot.slane %v684, 4
      %v686 = vadd.f32 %v684, %v685
      %v687 = vrot.slane %v686, 2
      %v688 = vadd.f32 %v686, %v687
      %v689 = vrot.slane %v688, 1
      %v690 = vadd.f32 %v688, %v689
      %v691 = vadd.f32 %v621, %v690
      %692 = vst [vmem:[%s4] sm:$0x1] %v691
      %s693 = smul.u32 32, %s16
      %p694 = scmp.lt.s32.totalorder %s693, 63
      %s695 = scalar_select %p694, %s693, 63
      %s696 = smul.addr %s695, 8
      %s697 = scalar_lea.vmem %s2, %s696
      // Predicated region
      $region33: #{conv_block_forward.2} parent=27 // pred_check
        %p698 = pneg %p81
      $region34: #{conv_block_forward.2} parent=27 // pred_check_branch
        %700 = sbr.rel (%p698) target = $region36
      $region35: #{conv_block_forward.2} parent=27 // pred_region
        %s701 = smul.u32 32, %s16
      $region36: #{conv_block_forward.2} parent=27 // pred_fallthru
        _
      // Predicated region
      $region37: #{conv_block_forward.2} parent=27 // pred_check
        %p702 = pneg %p102
      $region38: #{conv_block_forward.2} parent=27 // pred_check_branch
        %704 = sbr.rel (%p702) target = $region40
      $region39: #{conv_block_forward.2} parent=27 // pred_region
        _
      $region40: #{conv_block_forward.2} parent=27 // pred_fallthru
        _
      // Predicated region
      $region41: #{conv_block_forward.2} parent=27 // pred_check
        %p705 = pneg %p123
      $region42: #{conv_block_forward.2} parent=27 // pred_check_branch
        %707 = sbr.rel (%p705) target = $region44
      $region43: #{conv_block_forward.2} parent=27 // pred_region
        _
      $region44: #{conv_block_forward.2} parent=27 // pred_fallthru
        _
      // Predicated region
      $region45: #{conv_block_forward.2} parent=27 // pred_check
        %p708 = pneg %p102
      $region46: #{conv_block_forward.2} parent=27 // pred_check_branch
        %710 = sbr.rel (%p708) target = $region48
      $region47: #{conv_block_forward.2} parent=27 // pred_region
        _
      $region48: #{conv_block_forward.2} parent=27 // pred_fallthru
        _
      // Predicated region
      $region49: #{conv_block_forward.2} parent=27 // pred_check
        %p711 = pneg %p123
      $region50: #{conv_block_forward.2} parent=27 // pred_check_branch
        %713 = sbr.rel (%p711) target = $region52
      $region51: #{conv_block_forward.2} parent=27 // pred_region
        _
      $region52: #{conv_block_forward.2} parent=27 // pred_fallthru
        _
    $region28: #{conv_block_forward.2} parent=5 // pred_fallthru
      _
    %p714 = scmp.le.s32.totalorder 2, %s11
    // Predicated region
    $region53: #{conv_block_forward.2} parent=5 // pred_check
      %p715 = pneg %p714
    $region54: #{conv_block_forward.2} parent=5 // pred_check_branch
      %717 = sbr.rel (%p715) target = $region56
    $region55: #{conv_block_forward.2} parent=5 // pred_region
      %s718 = ssub.s32 %s11, 2
      // Predicated region
      $region57: #{conv_block_forward.2} parent=55 // pred_check
        %p719 = pneg %p87
      $region58: #{conv_block_forward.2} parent=55 // pred_check_branch
        %721 = sbr.rel (%p719) target = $region60
      $region59: #{conv_block_forward.2} parent=55 // pred_region
        %s722 = smul.u32 32, %s17
        %p723 = scmp.lt.s32.totalorder %s722, 63
        %s724 = scalar_select %p723, %s722, 63
        %s725 = smul.addr %s724, 8
        %s726 = scalar_lea.vmem %s2, %s725
      $region60: #{conv_block_forward.2} parent=55 // pred_fallthru
        _
    $region56: #{conv_block_forward.2} parent=5 // pred_fallthru
      _
  $region6: #{conv_block_forward.2} parent=0 // loop_footer
    %s15 = sadd.s32 1, %s11
  $region7: #{conv_block_forward.2} parent=0 // loop_footer_branch
    %10 = sbr.rel target = $region3
  $region8: #{conv_block_forward.2} parent=0 // loop_exit
    _

</llo_original>
